<compile_context>
chip_gen: v7x
topology: tpu7x:2x2x1
jax: 0.10.0
libtpu: 0.0.40
codegen_flags: <defaults>
</compile_context>

<pallas_src>
import functools

import numpy as np

import jax
import jax.numpy as jnp
from jax.experimental import pallas as pl
from jax.experimental.pallas import tpu as pltpu


def _psd_loss_kernel(x_ref, y_ref, cos_ref, sin_ref, out_ref, *, n_bins, batch):
    x = x_ref[...].astype(jnp.float32)     # (B, T) preds   (time on lanes)
    y = y_ref[...].astype(jnp.float32)     # (B, T) labels
    c = cos_ref[...]                       # (T, K)  cos(2*pi*k*t/T) / T
    s = sin_ref[...]                       # (T, K) -sin(2*pi*k*t/T) / T

    # x - mean(x, dim=-1, keepdim=True)
    x = x - jnp.mean(x, axis=-1, keepdims=True)
    y = y - jnp.mean(y, axis=-1, keepdims=True)

    def norm_psd(sig):
        re = jnp.dot(sig, c, preferred_element_type=jnp.float32,
                     precision=jax.lax.Precision.HIGHEST)          # (B, K)
        im = jnp.dot(sig, s, preferred_element_type=jnp.float32,
                     precision=jax.lax.Precision.HIGHEST)          # (B, K)
        p = re * re + im * im                                      # power
        return p / jnp.sum(p, axis=-1, keepdims=True)              # normalize

    d = norm_psd(x) - norm_psd(y)                                  # (B, K)

    # MSE (mean over K bins) per item, then averaged over the batch:
    #   sum(d^2) / (K * B)   (every item has the same K)
    per_item = jnp.sum(d * d, axis=-1, keepdims=True)              # (B, 1)
    total = jnp.sum(per_item, axis=0, keepdims=True)               # (1, 1)
    out_ref[...] = total * (1.0 / (n_bins * batch))


def psd_loss(preds, labels, *, Fs, high_pass=40, low_pass=180):
    """preds, labels: (B, T) float arrays of time-domain signals.
    Returns the scalar PSDLoss (batch-mean of the MSE between band-limited,
    normalized power spectra), matching PSDLoss.forward."""
    B, T = preds.shape
    assert labels.shape == (B, T)

    # Static frequency-bin selection (exactly as CalculateNormPSD computes it).
    n_rfft = T // 2 + 1
    freqs = np.linspace(0.0, Fs / 2.0, n_rfft)
    use = np.logical_and(freqs >= high_pass / 60.0, freqs <= low_pass / 60.0)
    k_sel = np.nonzero(use)[0].astype(np.float64)
    K = int(k_sel.size)
    assert K > 0, "empty frequency band for the given Fs / high_pass / low_pass"

    # Band-limited real-DFT matrices; norm='forward' -> divide by T.
    t = np.arange(T, dtype=np.float64)[:, None]                    # (T, 1)
    ang = 2.0 * np.pi * t * k_sel[None, :] / T                     # (T, K)
    cos_m = jnp.asarray((np.cos(ang) / T).astype(np.float32))
    sin_m = jnp.asarray((-np.sin(ang) / T).astype(np.float32))

    kernel = functools.partial(_psd_loss_kernel,
                               n_bins=float(K), batch=float(B))

    out = pl.pallas_call(
        kernel,
        out_shape=jax.ShapeDtypeStruct((1, 1), jnp.float32),
        in_specs=[pl.BlockSpec(memory_space=pltpu.MemorySpace.VMEM)] * 4,
        out_specs=pl.BlockSpec(memory_space=pltpu.MemorySpace.VMEM),
    )(preds.astype(jnp.float32), labels.astype(jnp.float32), cos_m, sin_m)
    return out[0, 0]


def _reference_psd_loss(preds, labels, Fs, high_pass=40, low_pass=180):
    """Pure-JAX reference mirroring PSDLoss.forward (uses jnp.fft.rfft)."""
    B, T = preds.shape
    n_rfft = T // 2 + 1
    freqs = np.linspace(0.0, Fs / 2.0, n_rfft)
    use = np.logical_and(freqs >= high_pass / 60.0, freqs <= low_pass / 60.0)

    def norm_psd(x):
        x = x.astype(jnp.float32)
        x = x - jnp.mean(x, axis=-1, keepdims=True)
        X = jnp.fft.rfft(x, axis=-1) / T                # norm='forward'
        p = jnp.real(X) ** 2 + jnp.imag(X) ** 2         # (B, n_rfft)
        p = p[:, use]
        return p / jnp.sum(p, axis=-1, keepdims=True)

    d = norm_psd(preds) - norm_psd(labels)
    return jnp.mean(jnp.mean(d * d, axis=-1))           # mean over K, then B


if __name__ == "__main__":
    key = jax.random.PRNGKey(0)
    k1, k2 = jax.random.split(key)

    # Small, module-consistent shapes: 2 time signals (e.g. rPPG clips) of
    # 160 samples at Fs = 30 Hz.
    B, T = 2, 160
    Fs = 30.0
    preds = jax.random.normal(k1, (B, T), dtype=jnp.float32)
    labels = jax.random.normal(k2, (B, T), dtype=jnp.float32)

    loss = psd_loss(preds, labels, Fs=Fs)
    loss = jax.block_until_ready(loss)

    ref = _reference_psd_loss(preds, labels, Fs)
    assert jnp.allclose(loss, ref, rtol=1e-3, atol=1e-6), (loss, ref)

    print("KERNEL_OK")
</pallas_src>

<mosaic_0001>
module attributes {stable_mosaic.version = 11 : i64} {
  func.func @_psd_loss_kernel(%arg0: memref<2x160xf32, #tpu.memory_space<vmem>>, %arg1: memref<2x160xf32, #tpu.memory_space<vmem>>, %arg2: memref<160x13xf32, #tpu.memory_space<vmem>>, %arg3: memref<160x13xf32, #tpu.memory_space<vmem>>, %arg4: memref<1x1xf32, #tpu.memory_space<vmem>>) attributes {dimension_semantics = [], scalar_prefetch = 0 : i64, scratch_operands = 0 : i64, tpu.core_type = #tpu.core_type<tc>} {
    %c0 = arith.constant 0 : index
    %c0_0 = arith.constant 0 : index
    %0 = vector.load %arg0[%c0, %c0_0] : memref<2x160xf32, #tpu.memory_space<vmem>>, vector<2x160xf32>
    %c0_1 = arith.constant 0 : index
    %c0_2 = arith.constant 0 : index
    %1 = vector.load %arg1[%c0_1, %c0_2] : memref<2x160xf32, #tpu.memory_space<vmem>>, vector<2x160xf32>
    %c0_3 = arith.constant 0 : index
    %c0_4 = arith.constant 0 : index
    %2 = vector.load %arg2[%c0_3, %c0_4] : memref<160x13xf32, #tpu.memory_space<vmem>>, vector<160x13xf32>
    %c0_5 = arith.constant 0 : index
    %c0_6 = arith.constant 0 : index
    %3 = vector.load %arg3[%c0_5, %c0_6] : memref<160x13xf32, #tpu.memory_space<vmem>>, vector<160x13xf32>
    %cst = arith.constant dense<0.000000e+00> : vector<2xf32>
    %4 = vector.multi_reduction <add>, %0, %cst [1] : vector<2x160xf32> to vector<2xf32>
    %5 = vector.shape_cast %4 : vector<2xf32> to vector<2x1xf32>
    %cst_7 = arith.constant 1.600000e+02 : f32
    %6 = vector.broadcast %cst_7 : f32 to vector<2x1xf32>
    %7 = arith.divf %5, %6 : vector<2x1xf32>
    %8 = vector.broadcast %7 : vector<2x1xf32> to vector<2x160xf32>
    %9 = arith.subf %0, %8 : vector<2x160xf32>
    %cst_8 = arith.constant dense<0.000000e+00> : vector<2xf32>
    %10 = vector.multi_reduction <add>, %1, %cst_8 [1] : vector<2x160xf32> to vector<2xf32>
    %11 = vector.shape_cast %10 : vector<2xf32> to vector<2x1xf32>
    %cst_9 = arith.constant 1.600000e+02 : f32
    %12 = vector.broadcast %cst_9 : f32 to vector<2x1xf32>
    %13 = arith.divf %11, %12 : vector<2x1xf32>
    %14 = vector.broadcast %13 : vector<2x1xf32> to vector<2x160xf32>
    %15 = arith.subf %1, %14 : vector<2x160xf32>
    %cst_10 = arith.constant dense<0.000000e+00> : vector<2x13xf32>
    %16 = tpu.matmul %9, %2, %cst_10 {dimension_numbers = #tpu.dot_dimension_numbers<[1], [0], [0], [1], [0, 0, 1, 1], [], []>, precision = #tpu.contract_precision<fp32>} : vector<2x160xf32>, vector<160x13xf32>, vector<2x13xf32> -> vector<2x13xf32>
    %cst_11 = arith.constant dense<0.000000e+00> : vector<2x13xf32>
    %17 = tpu.matmul %9, %3, %cst_11 {dimension_numbers = #tpu.dot_dimension_numbers<[1], [0], [0], [1], [0, 0, 1, 1], [], []>, precision = #tpu.contract_precision<fp32>} : vector<2x160xf32>, vector<160x13xf32>, vector<2x13xf32> -> vector<2x13xf32>
    %18 = arith.mulf %16, %16 : vector<2x13xf32>
    %19 = arith.mulf %17, %17 : vector<2x13xf32>
    %20 = arith.addf %18, %19 : vector<2x13xf32>
    %cst_12 = arith.constant dense<0.000000e+00> : vector<2xf32>
    %21 = vector.multi_reduction <add>, %20, %cst_12 [1] : vector<2x13xf32> to vector<2xf32>
    %22 = vector.shape_cast %21 : vector<2xf32> to vector<2x1xf32>
    %23 = vector.broadcast %22 : vector<2x1xf32> to vector<2x13xf32>
    %24 = arith.divf %20, %23 : vector<2x13xf32>
    %cst_13 = arith.constant dense<0.000000e+00> : vector<2x13xf32>
    %25 = tpu.matmul %15, %2, %cst_13 {dimension_numbers = #tpu.dot_dimension_numbers<[1], [0], [0], [1], [0, 0, 1, 1], [], []>, precision = #tpu.contract_precision<fp32>} : vector<2x160xf32>, vector<160x13xf32>, vector<2x13xf32> -> vector<2x13xf32>
    %cst_14 = arith.constant dense<0.000000e+00> : vector<2x13xf32>
    %26 = tpu.matmul %15, %3, %cst_14 {dimension_numbers = #tpu.dot_dimension_numbers<[1], [0], [0], [1], [0, 0, 1, 1], [], []>, precision = #tpu.contract_precision<fp32>} : vector<2x160xf32>, vector<160x13xf32>, vector<2x13xf32> -> vector<2x13xf32>
    %27 = arith.mulf %25, %25 : vector<2x13xf32>
    %28 = arith.mulf %26, %26 : vector<2x13xf32>
    %29 = arith.addf %27, %28 : vector<2x13xf32>
    %cst_15 = arith.constant dense<0.000000e+00> : vector<2xf32>
    %30 = vector.multi_reduction <add>, %29, %cst_15 [1] : vector<2x13xf32> to vector<2xf32>
    %31 = vector.shape_cast %30 : vector<2xf32> to vector<2x1xf32>
    %32 = vector.broadcast %31 : vector<2x1xf32> to vector<2x13xf32>
    %33 = arith.divf %29, %32 : vector<2x13xf32>
    %34 = arith.subf %24, %33 : vector<2x13xf32>
    %35 = arith.mulf %34, %34 : vector<2x13xf32>
    %cst_16 = arith.constant dense<0.000000e+00> : vector<2xf32>
    %36 = vector.multi_reduction <add>, %35, %cst_16 [1] : vector<2x13xf32> to vector<2xf32>
    %37 = vector.shape_cast %36 : vector<2xf32> to vector<2x1xf32>
    %cst_17 = arith.constant dense<0.000000e+00> : vector<1xf32>
    %38 = vector.multi_reduction <add>, %37, %cst_17 [0] : vector<2x1xf32> to vector<1xf32>
    %39 = vector.shape_cast %38 : vector<1xf32> to vector<1x1xf32>
    %cst_18 = arith.constant 0.0384615399 : f32
    %40 = vector.broadcast %cst_18 : f32 to vector<1x1xf32>
    %41 = arith.mulf %39, %40 : vector<1x1xf32>
    %c0_19 = arith.constant 0 : index
    %c0_20 = arith.constant 0 : index
    %42 = vector.load %arg4[%c0_19, %c0_20] : memref<1x1xf32, #tpu.memory_space<vmem>>, vector<1x1xf32>
    tpu.vector_store %arg4[%c0_19, %c0_20], %41 {strides = array<i32>} : memref<1x1xf32, #tpu.memory_space<vmem>>, vector<1x1xf32>,
    return
  }
}

</mosaic_0001>

<llo_original>
// kernel: tpu_custom_call.1
$region0: #{tpu_custom_call.1}
  #allocation0 [shape = 'u32[]', space=smem, size = 0x4, offset = 0x4, fixed_abs, tag = 'smem constant byte address 0x4 - core index']
  #allocation1 [shape = 'u32[144,128]{1,0:T(1,128)}', space=vmem, size = 0x12000, scoped, tag = 'internal scratch']
  %s0 = inlined_call_operand.vmem [shape: f32[2,160], index: 0, kind: input, shape index: {}]
  %s1 = inlined_call_operand.vmem [shape: f32[2,160], index: 1, kind: input, shape index: {}]
  %s2 = inlined_call_operand.vmem [shape: f32[160,13], index: 2, kind: input, shape index: {}]
  %s3 = inlined_call_operand.vmem [shape: f32[160,13], index: 3, kind: input, shape index: {}]
  %s4 = inlined_call_operand.hbm [shape: f32[1,1], index: 4, kind: output, shape index: {}]
  %s5 = sld [smem:[#allocation0]]
  $region26: #{tpu_custom_call.1} parent=0
    _
  %s7 = ssub.s32 1, %s5
  %s8 = scalar_select 0, %s7, %s5
  $region1: #{tpu_custom_call.1} parent=0
    #allocation2 [shape = 'u8[512]{0}', space=vmem, size = 0x400, scoped, tag = 'output window, operand 0, single buffered']
    #allocation3 [shape = 's32[1]{0}', space=sflag, size = 0x4, scoped, tag = 'scoped memory for tpu_custom_call.1']
    %9 = vsyncpa [#allocation3], 0
    // Predicated region
    $region2: #{tpu_custom_call.1} parent=1 // pred_check
      _
    $region3: #{tpu_custom_call.1} parent=1 // pred_check_branch
      %11 = sbr.rel (0) target = $region5
    $region4: #{tpu_custom_call.1} parent=1 // pred_region
      _
    $region5: #{tpu_custom_call.1} parent=1 // pred_fallthru
      _
    // Predicated region
    $region6: #{tpu_custom_call.1} parent=1 // pred_check
      _
    $region7: #{tpu_custom_call.1} parent=1 // pred_check_branch
      %13 = sbr.rel (0) target = $region9
    $region8: #{tpu_custom_call.1} parent=1 // pred_region
      _
    $region9: #{tpu_custom_call.1} parent=1 // pred_fallthru
      _
    // Predicated region
    $region10: #{tpu_custom_call.1} parent=1 // pred_check
      _
    $region11: #{tpu_custom_call.1} parent=1 // pred_check_branch
      %15 = sbr.rel (0) target = $region13
    $region12: #{tpu_custom_call.1} parent=1 // pred_region
      _
    $region13: #{tpu_custom_call.1} parent=1 // pred_fallthru
      _
    // Predicated region
    $region14: #{tpu_custom_call.1} parent=1 // pred_check
      _
    $region15: #{tpu_custom_call.1} parent=1 // pred_check_branch
      %17 = sbr.rel (0) target = $region17
    $region16: #{tpu_custom_call.1} parent=1 // pred_region
      _
    $region17: #{tpu_custom_call.1} parent=1 // pred_fallthru
      _
    %v18 = vld [vmem:[%s0] sm:$0xf]
    %v19 = vld [vmem:[%s1] sm:$0xf]
    %v20 = vld [vmem:[%s2] sm:$0xff]
    %v21 = vld [vmem:[%s2 + $0x8] sm:$0xff]
    %v22 = vld [vmem:[%s2 + $0x10] sm:$0xff]
    %v23 = vld [vmem:[%s2 + $0x18] sm:$0xff]
    %v24 = vld [vmem:[%s2 + $0x20] sm:$0xff]
    %v25 = vld [vmem:[%s2 + $0x28] sm:$0xff]
    %v26 = vld [vmem:[%s2 + $0x30] sm:$0xff]
    %v27 = vld [vmem:[%s2 + $0x38] sm:$0xff]
    %v28 = vld [vmem:[%s2 + $0x40] sm:$0xff]
    %v29 = vld [vmem:[%s2 + $0x48] sm:$0xff]
    %v30 = vld [vmem:[%s2 + $0x50] sm:$0xff]
    %v31 = vld [vmem:[%s2 + $0x58] sm:$0xff]
    %v32 = vld [vmem:[%s2 + $0x60] sm:$0xff]
    %v33 = vld [vmem:[%s2 + $0x68] sm:$0xff]
    %v34 = vld [vmem:[%s2 + $0x70] sm:$0xff]
    %v35 = vld [vmem:[%s2 + $0x78] sm:$0xff]
    %v36 = vld [vmem:[%s2 + $0x80] sm:$0xff]
    %v37 = vld [vmem:[%s2 + $0x88] sm:$0xff]
    %v38 = vld [vmem:[%s2 + $0x90] sm:$0xff]
    %v39 = vld [vmem:[%s2 + $0x98] sm:$0xff]
    %v40 = vld [vmem:[%s3] sm:$0xff]
    %v41 = vld [vmem:[%s3 + $0x8] sm:$0xff]
    %v42 = vld [vmem:[%s3 + $0x10] sm:$0xff]
    %v43 = vld [vmem:[%s3 + $0x18] sm:$0xff]
    %v44 = vld [vmem:[%s3 + $0x20] sm:$0xff]
    %v45 = vld [vmem:[%s3 + $0x28] sm:$0xff]
    %v46 = vld [vmem:[%s3 + $0x30] sm:$0xff]
    %v47 = vld [vmem:[%s3 + $0x38] sm:$0xff]
    %v48 = vld [vmem:[%s3 + $0x40] sm:$0xff]
    %v49 = vld [vmem:[%s3 + $0x48] sm:$0xff]
    %v50 = vld [vmem:[%s3 + $0x50] sm:$0xff]
    %v51 = vld [vmem:[%s3 + $0x58] sm:$0xff]
    %v52 = vld [vmem:[%s3 + $0x60] sm:$0xff]
    %v53 = vld [vmem:[%s3 + $0x68] sm:$0xff]
    %v54 = vld [vmem:[%s3 + $0x70] sm:$0xff]
    %v55 = vld [vmem:[%s3 + $0x78] sm:$0xff]
    %v56 = vld [vmem:[%s3 + $0x80] sm:$0xff]
    %v57 = vld [vmem:[%s3 + $0x88] sm:$0xff]
    %v58 = vld [vmem:[%s3 + $0x90] sm:$0xff]
    %v59 = vld [vmem:[%s3 + $0x98] sm:$0xff]
    %v62 = vunpack.c.l.s4 1983009808
    %v63 = vunpack.c.0.s8 %v62
    %v64 = vlaneseq
    %v65 = vshrl.u32 %v64, 7
    %v66 = vsub.s32 %v63, %v65
    %v67 = vrot.slane %v18, %v66
    %v68 = vcombine.high %v67, %v67
    %vm71 = vcmask 1041408
    %v72 = vsel %vm71, %v67, 0.0
    %vm73 = vcmask 254976
    %v74 = vsel %vm73, %v68, 0.0
    %v75 = vadd.f32 %v72, %v74
    %76 = vadd.xlane.f32.xlu0 %v75
    %v77 = vpop.xlane.xlu0 %76
    %v78 = vrcp.pop 160.0
    %v79 = vmul.f32 %v77, %v78
    %v82 = vunpack.c.l.s4 269488144
    %v83 = vunpack.c.0.s8 %v82
    %v84 = vlaneseq
    %v85 = vshrl.u32 %v84, 7
    %v86 = vsub.s32 %v83, %v85
    %v87 = vrot.slane %v79, %v86
    %v89 = vsub.f32 %v18, %v87
    %v92 = vunpack.c.l.s4 1983009808
    %v93 = vunpack.c.0.s8 %v92
    %v94 = vlaneseq
    %v95 = vshrl.u32 %v94, 7
    %v96 = vsub.s32 %v93, %v95
    %v97 = vrot.slane %v19, %v96
    %v98 = vcombine.high %v97, %v97
    %v101 = vsel %vm71, %v97, 0.0
    %v102 = vsel %vm73, %v98, 0.0
    %v103 = vadd.f32 %v101, %v102
    %104 = vadd.xlane.f32.xlu0 %v103
    %v105 = vpop.xlane.xlu0 %104
    %v106 = vmul.f32 %v105, %v78
    %v109 = vunpack.c.l.s4 269488144
    %v110 = vunpack.c.0.s8 %v109
    %v111 = vlaneseq
    %v112 = vshrl.u32 %v111, 7
    %v113 = vsub.s32 %v110, %v112
    %v114 = vrot.slane %v106, %v113
    %v116 = vsub.f32 %v19, %v114
    %v119 = vunpack.c.l.s4 1983009808
    %v120 = vunpack.c.0.s8 %v119
    %v121 = vlaneseq
    %v122 = vshrl.u32 %v121, 7
    %v123 = vsub.s32 %v120, %v122
    %v124 = vrot.slane %v89, %v123
    %v125 = vcombine.high %v124, %v124
    %vm127 = vcmask 261120
    %v128 = vsel %vm127, %v125, 0
    %130 = vmatprep.subr.mxu0 0.0
    %v131 = vand.u32 %v20, 4294901760
    %132 = vmatpush1.msra.mxu0 %v131
    %133 = vmatprep.subr.mxu0 0.0
    %v134 = vand.u32 %v21, 4294901760
    %135 = vmatpush1.msra.mxu0 %v134
    %136 = vmatprep.subr.mxu0 0.0
    %v137 = vand.u32 %v22, 4294901760
    %138 = vmatpush1.msra.mxu0 %v137
    %139 = vmatprep.subr.mxu0 0.0
    %v140 = vand.u32 %v23, 4294901760
    %141 = vmatpush1.msra.mxu0 %v140
    %142 = vmatprep.subr.mxu0 0.0
    %v143 = vand.u32 %v24, 4294901760
    %144 = vmatpush1.msra.mxu0 %v143
    %145 = vmatprep.subr.mxu0 0.0
    %v146 = vand.u32 %v25, 4294901760
    %147 = vmatpush1.msra.mxu0 %v146
    %148 = vmatprep.subr.mxu0 0.0
    %v149 = vand.u32 %v26, 4294901760
    %150 = vmatpush1.msra.mxu0 %v149
    %151 = vmatprep.subr.mxu0 0.0
    %v152 = vand.u32 %v27, 4294901760
    %153 = vmatpush1.msra.mxu0 %v152
    %154 = vmatprep.subr.mxu0 0.0
    %v155 = vand.u32 %v28, 4294901760
    %156 = vmatpush1.msra.mxu0 %v155
    %157 = vmatprep.subr.mxu0 0.0
    %v158 = vand.u32 %v29, 4294901760
    %159 = vmatpush1.msra.mxu0 %v158
    %160 = vmatprep.subr.mxu0 0.0
    %v161 = vand.u32 %v30, 4294901760
    %162 = vmatpush1.msra.mxu0 %v161
    %163 = vmatprep.subr.mxu0 0.0
    %v164 = vand.u32 %v31, 4294901760
    %165 = vmatpush1.msra.mxu0 %v164
    %166 = vmatprep.subr.mxu0 0.0
    %v167 = vand.u32 %v32, 4294901760
    %168 = vmatpush1.msra.mxu0 %v167
    %169 = vmatprep.subr.mxu0 0.0
    %v170 = vand.u32 %v33, 4294901760
    %171 = vmatpush1.msra.mxu0 %v170
    %172 = vmatprep.subr.mxu0 0.0
    %v173 = vand.u32 %v34, 4294901760
    %174 = vmatpush1.msra.mxu0 %v173
    %175 = vmatprep.subr.mxu0 0.0
    %v176 = vand.u32 %v35, 4294901760
    %177 = vmatpush1.msra.mxu0 %v176
    %178 = vmatprep.subr.mxu0 0.0
    %v179 = vand.u32 %v36, 4294901760
    %180 = vmatpush1.msra.mxu0 %v179
    %181 = vmatprep.subr.mxu0 0.0
    %v182 = vand.u32 %v37, 4294901760
    %183 = vmatpush1.msra.mxu0 %v182
    %184 = vmatprep.subr.mxu0 0.0
    %v185 = vand.u32 %v38, 4294901760
    %186 = vmatpush1.msra.mxu0 %v185
    %187 = vmatprep.subr.mxu0 0.0
    %v188 = vand.u32 %v39, 4294901760
    %189 = vmatpush1.msra.mxu0 %v188
    %190 = vmatprep.subr.mxu0 0.0
    %191 = vmatpush1.msra.mxu0 0.0
    %192 = vmatprep.subr.mxu0 0.0
    %193 = vmatpush1.msra.mxu0 0.0
    %194 = vmatprep.subr.mxu0 0.0
    %195 = vmatpush1.msra.mxu0 0.0
    %196 = vmatprep.subr.mxu0 0.0
    %197 = vmatpush1.msra.mxu0 0.0
    %198 = vmatprep.subr.mxu0 0.0
    %199 = vmatpush1.msra.mxu0 0.0
    %200 = vmatprep.subr.mxu0 0.0
    %201 = vmatpush1.msra.mxu0 0.0
    %202 = vmatprep.subr.mxu0 0.0
    %203 = vmatpush1.msra.mxu0 0.0
    %204 = vmatprep.subr.mxu0 0.0
    %205 = vmatpush1.msra.mxu0 0.0
    %206 = vmatprep.subr.mxu0 0.0
    %207 = vmatpush1.msra.mxu0 0.0
    %208 = vmatprep.subr.mxu0 0.0
    %209 = vmatpush1.msra.mxu0 0.0
    %210 = vmatprep.subr.mxu0 0.0
    %211 = vmatpush1.msra.mxu0 0.0
    %212 = vmatprep.subr.mxu0 0.0
    %213 = vmatpush1.msra.mxu0 0.0
    %v214 = vand.u32 %v128, 4294901760
    %v215 = vsub.f32 %v128, %v214
    %v216 = vand.u32 %v215, 4294901760
    %v217 = vsub.f32 %v215, %v216
    %v218 = vand.u32 %v217, 4294901760
    %219 = vmatprep.mubr.f32.mxu0 %v218
    %v220 = vand.u32 %v124, 4294901760
    %v221 = vsub.f32 %v124, %v220
    %v222 = vand.u32 %v221, 4294901760
    %v223 = vsub.f32 %v221, %v222
    %v224 = vand.u32 %v223, 4294901760
    %225 = vmatmul.mubr.f32.gmra.mrb[0].mxu0 %v224
    %v226 = vpop.f32.mrb[0].mxu0
    %v227 = vadd.f32 0.0, %v226
    %v228 = vpop.f32.mrb[0].mxu0
    %229 = vdwg.mxu0
    %230 = vmatprep.subr.mxu0 0.0
    %v231 = vand.u32 %v20, 4294901760
    %v232 = vsub.f32 %v20, %v231
    %v233 = vand.u32 %v232, 4294901760
    %v234 = vsub.f32 %v232, %v233
    %v235 = vand.u32 %v234, 4294901760
    %236 = vmatpush1.msra.mxu0 %v235
    %237 = vmatprep.subr.mxu0 0.0
    %v238 = vand.u32 %v21, 4294901760
    %v239 = vsub.f32 %v21, %v238
    %v240 = vand.u32 %v239, 4294901760
    %v241 = vsub.f32 %v239, %v240
    %v242 = vand.u32 %v241, 4294901760
    %243 = vmatpush1.msra.mxu0 %v242
    %244 = vmatprep.subr.mxu0 0.0
    %v245 = vand.u32 %v22, 4294901760
    %v246 = vsub.f32 %v22, %v245
    %v247 = vand.u32 %v246, 4294901760
    %v248 = vsub.f32 %v246, %v247
    %v249 = vand.u32 %v248, 4294901760
    %250 = vmatpush1.msra.mxu0 %v249
    %251 = vmatprep.subr.mxu0 0.0
    %v252 = vand.u32 %v23, 4294901760
    %v253 = vsub.f32 %v23, %v252
    %v254 = vand.u32 %v253, 4294901760
    %v255 = vsub.f32 %v253, %v254
    %v256 = vand.u32 %v255, 4294901760
    %257 = vmatpush1.msra.mxu0 %v256
    %258 = vmatprep.subr.mxu0 0.0
    %v259 = vand.u32 %v24, 4294901760
    %v260 = vsub.f32 %v24, %v259
    %v261 = vand.u32 %v260, 4294901760
    %v262 = vsub.f32 %v260, %v261
    %v263 = vand.u32 %v262, 4294901760
    %264 = vmatpush1.msra.mxu0 %v263
    %265 = vmatprep.subr.mxu0 0.0
    %v266 = vand.u32 %v25, 4294901760
    %v267 = vsub.f32 %v25, %v266
    %v268 = vand.u32 %v267, 4294901760
    %v269 = vsub.f32 %v267, %v268
    %v270 = vand.u32 %v269, 4294901760
    %271 = vmatpush1.msra.mxu0 %v270
    %272 = vmatprep.subr.mxu0 0.0
    %v273 = vand.u32 %v26, 4294901760
    %v274 = vsub.f32 %v26, %v273
    %v275 = vand.u32 %v274, 4294901760
    %v276 = vsub.f32 %v274, %v275
    %v277 = vand.u32 %v276, 4294901760
    %278 = vmatpush1.msra.mxu0 %v277
    %279 = vmatprep.subr.mxu0 0.0
    %v280 = vand.u32 %v27, 4294901760
    %v281 = vsub.f32 %v27, %v280
    %v282 = vand.u32 %v281, 4294901760
    %v283 = vsub.f32 %v281, %v282
    %v284 = vand.u32 %v283, 4294901760
    %285 = vmatpush1.msra.mxu0 %v284
    %286 = vmatprep.subr.mxu0 0.0
    %v287 = vand.u32 %v28, 4294901760
    %v288 = vsub.f32 %v28, %v287
    %v289 = vand.u32 %v288, 4294901760
    %v290 = vsub.f32 %v288, %v289
    %v291 = vand.u32 %v290, 4294901760
    %292 = vmatpush1.msra.mxu0 %v291
    %293 = vmatprep.subr.mxu0 0.0
    %v294 = vand.u32 %v29, 4294901760
    %v295 = vsub.f32 %v29, %v294
    %v296 = vand.u32 %v295, 4294901760
    %v297 = vsub.f32 %v295, %v296
    %v298 = vand.u32 %v297, 4294901760
    %299 = vmatpush1.msra.mxu0 %v298
    %300 = vmatprep.subr.mxu0 0.0
    %v301 = vand.u32 %v30, 4294901760
    %v302 = vsub.f32 %v30, %v301
    %v303 = vand.u32 %v302, 4294901760
    %v304 = vsub.f32 %v302, %v303
    %v305 = vand.u32 %v304, 4294901760
    %306 = vmatpush1.msra.mxu0 %v305
    %307 = vmatprep.subr.mxu0 0.0
    %v308 = vand.u32 %v31, 4294901760
    %v309 = vsub.f32 %v31, %v308
    %v310 = vand.u32 %v309, 4294901760
    %v311 = vsub.f32 %v309, %v310
    %v312 = vand.u32 %v311, 4294901760
    %313 = vmatpush1.msra.mxu0 %v312
    %314 = vmatprep.subr.mxu0 0.0
    %v315 = vand.u32 %v32, 4294901760
    %v316 = vsub.f32 %v32, %v315
    %v317 = vand.u32 %v316, 4294901760
    %v318 = vsub.f32 %v316, %v317
    %v319 = vand.u32 %v318, 4294901760
    %320 = vmatpush1.msra.mxu0 %v319
    %321 = vmatprep.subr.mxu0 0.0
    %v322 = vand.u32 %v33, 4294901760
    %v323 = vsub.f32 %v33, %v322
    %v324 = vand.u32 %v323, 4294901760
    %v325 = vsub.f32 %v323, %v324
    %v326 = vand.u32 %v325, 4294901760
    %327 = vmatpush1.msra.mxu0 %v326
    %328 = vmatprep.subr.mxu0 0.0
    %v329 = vand.u32 %v34, 4294901760
    %v330 = vsub.f32 %v34, %v329
    %v331 = vand.u32 %v330, 4294901760
    %v332 = vsub.f32 %v330, %v331
    %v333 = vand.u32 %v332, 4294901760
    %334 = vmatpush1.msra.mxu0 %v333
    %335 = vmatprep.subr.mxu0 0.0
    %v336 = vand.u32 %v35, 4294901760
    %v337 = vsub.f32 %v35, %v336
    %v338 = vand.u32 %v337, 4294901760
    %v339 = vsub.f32 %v337, %v338
    %v340 = vand.u32 %v339, 4294901760
    %341 = vmatpush1.msra.mxu0 %v340
    %342 = vmatprep.subr.mxu0 0.0
    %v343 = vand.u32 %v36, 4294901760
    %v344 = vsub.f32 %v36, %v343
    %v345 = vand.u32 %v344, 4294901760
    %v346 = vsub.f32 %v344, %v345
    %v347 = vand.u32 %v346, 4294901760
    %348 = vmatpush1.msra.mxu0 %v347
    %349 = vmatprep.subr.mxu0 0.0
    %v350 = vand.u32 %v37, 4294901760
    %v351 = vsub.f32 %v37, %v350
    %v352 = vand.u32 %v351, 4294901760
    %v353 = vsub.f32 %v351, %v352
    %v354 = vand.u32 %v353, 4294901760
    %355 = vmatpush1.msra.mxu0 %v354
    %356 = vmatprep.subr.mxu0 0.0
    %v357 = vand.u32 %v38, 4294901760
    %v358 = vsub.f32 %v38, %v357
    %v359 = vand.u32 %v358, 4294901760
    %v360 = vsub.f32 %v358, %v359
    %v361 = vand.u32 %v360, 4294901760
    %362 = vmatpush1.msra.mxu0 %v361
    %363 = vmatprep.subr.mxu0 0.0
    %v364 = vand.u32 %v39, 4294901760
    %v365 = vsub.f32 %v39, %v364
    %v366 = vand.u32 %v365, 4294901760
    %v367 = vsub.f32 %v365, %v366
    %v368 = vand.u32 %v367, 4294901760
    %369 = vmatpush1.msra.mxu0 %v368
    %370 = vmatprep.subr.mxu0 0.0
    %371 = vmatpush1.msra.mxu0 0.0
    %372 = vmatprep.subr.mxu0 0.0
    %373 = vmatpush1.msra.mxu0 0.0
    %374 = vmatprep.subr.mxu0 0.0
    %375 = vmatpush1.msra.mxu0 0.0
    %376 = vmatprep.subr.mxu0 0.0
    %377 = vmatpush1.msra.mxu0 0.0
    %378 = vmatprep.subr.mxu0 0.0
    %379 = vmatpush1.msra.mxu0 0.0
    %380 = vmatprep.subr.mxu0 0.0
    %381 = vmatpush1.msra.mxu0 0.0
    %382 = vmatprep.subr.mxu0 0.0
    %383 = vmatpush1.msra.mxu0 0.0
    %384 = vmatprep.subr.mxu0 0.0
    %385 = vmatpush1.msra.mxu0 0.0
    %386 = vmatprep.subr.mxu0 0.0
    %387 = vmatpush1.msra.mxu0 0.0
    %388 = vmatprep.subr.mxu0 0.0
    %389 = vmatpush1.msra.mxu0 0.0
    %390 = vmatprep.subr.mxu0 0.0
    %391 = vmatpush1.msra.mxu0 0.0
    %392 = vmatprep.subr.mxu0 0.0
    %393 = vmatpush1.msra.mxu0 0.0
    %v394 = vand.u32 %v128, 4294901760
    %395 = vmatprep.mubr.f32.mxu0 %v394
    %v396 = vand.u32 %v124, 4294901760
    %397 = vmatmul.mubr.f32.gmra.mrb[0].mxu0 %v396
    %v398 = vpop.f32.mrb[0].mxu0
    %v399 = vadd.f32 %v227, %v398
    %v400 = vpop.f32.mrb[0].mxu0
    %401 = vdwg.mxu0
    %402 = vmatprep.subr.mxu0 0.0
    %v403 = vand.u32 %v20, 4294901760
    %v404 = vsub.f32 %v20, %v403
    %405 = vmatpush1.msra.mxu0 %v404
    %406 = vmatprep.subr.mxu0 0.0
    %v407 = vand.u32 %v21, 4294901760
    %v408 = vsub.f32 %v21, %v407
    %409 = vmatpush1.msra.mxu0 %v408
    %410 = vmatprep.subr.mxu0 0.0
    %v411 = vand.u32 %v22, 4294901760
    %v412 = vsub.f32 %v22, %v411
    %413 = vmatpush1.msra.mxu0 %v412
    %414 = vmatprep.subr.mxu0 0.0
    %v415 = vand.u32 %v23, 4294901760
    %v416 = vsub.f32 %v23, %v415
    %417 = vmatpush1.msra.mxu0 %v416
    %418 = vmatprep.subr.mxu0 0.0
    %v419 = vand.u32 %v24, 4294901760
    %v420 = vsub.f32 %v24, %v419
    %421 = vmatpush1.msra.mxu0 %v420
    %422 = vmatprep.subr.mxu0 0.0
    %v423 = vand.u32 %v25, 4294901760
    %v424 = vsub.f32 %v25, %v423
    %425 = vmatpush1.msra.mxu0 %v424
    %426 = vmatprep.subr.mxu0 0.0
    %v427 = vand.u32 %v26, 4294901760
    %v428 = vsub.f32 %v26, %v427
    %429 = vmatpush1.msra.mxu0 %v428
    %430 = vmatprep.subr.mxu0 0.0
    %v431 = vand.u32 %v27, 4294901760
    %v432 = vsub.f32 %v27, %v431
    %433 = vmatpush1.msra.mxu0 %v432
    %434 = vmatprep.subr.mxu0 0.0
    %v435 = vand.u32 %v28, 4294901760
    %v436 = vsub.f32 %v28, %v435
    %437 = vmatpush1.msra.mxu0 %v436
    %438 = vmatprep.subr.mxu0 0.0
    %v439 = vand.u32 %v29, 4294901760
    %v440 = vsub.f32 %v29, %v439
    %441 = vmatpush1.msra.mxu0 %v440
    %442 = vmatprep.subr.mxu0 0.0
    %v443 = vand.u32 %v30, 4294901760
    %v444 = vsub.f32 %v30, %v443
    %445 = vmatpush1.msra.mxu0 %v444
    %446 = vmatprep.subr.mxu0 0.0
    %v447 = vand.u32 %v31, 4294901760
    %v448 = vsub.f32 %v31, %v447
    %449 = vmatpush1.msra.mxu0 %v448
    %450 = vmatprep.subr.mxu0 0.0
    %v451 = vand.u32 %v32, 4294901760
    %v452 = vsub.f32 %v32, %v451
    %453 = vmatpush1.msra.mxu0 %v452
    %454 = vmatprep.subr.mxu0 0.0
    %v455 = vand.u32 %v33, 4294901760
    %v456 = vsub.f32 %v33, %v455
    %457 = vmatpush1.msra.mxu0 %v456
    %458 = vmatprep.subr.mxu0 0.0
    %v459 = vand.u32 %v34, 4294901760
    %v460 = vsub.f32 %v34, %v459
    %461 = vmatpush1.msra.mxu0 %v460
    %462 = vmatprep.subr.mxu0 0.0
    %v463 = vand.u32 %v35, 4294901760
    %v464 = vsub.f32 %v35, %v463
    %465 = vmatpush1.msra.mxu0 %v464
    %466 = vmatprep.subr.mxu0 0.0
    %v467 = vand.u32 %v36, 4294901760
    %v468 = vsub.f32 %v36, %v467
    %469 = vmatpush1.msra.mxu0 %v468
    %470 = vmatprep.subr.mxu0 0.0
    %v471 = vand.u32 %v37, 4294901760
    %v472 = vsub.f32 %v37, %v471
    %473 = vmatpush1.msra.mxu0 %v472
    %474 = vmatprep.subr.mxu0 0.0
    %v475 = vand.u32 %v38, 4294901760
    %v476 = vsub.f32 %v38, %v475
    %477 = vmatpush1.msra.mxu0 %v476
    %478 = vmatprep.subr.mxu0 0.0
    %v479 = vand.u32 %v39, 4294901760
    %v480 = vsub.f32 %v39, %v479
    %481 = vmatpush1.msra.mxu0 %v480
    %482 = vmatprep.subr.mxu0 0.0
    %483 = vmatpush1.msra.mxu0 0.0
    %484 = vmatprep.subr.mxu0 0.0
    %485 = vmatpush1.msra.mxu0 0.0
    %486 = vmatprep.subr.mxu0 0.0
    %487 = vmatpush1.msra.mxu0 0.0
    %488 = vmatprep.subr.mxu0 0.0
    %489 = vmatpush1.msra.mxu0 0.0
    %490 = vmatprep.subr.mxu0 0.0
    %491 = vmatpush1.msra.mxu0 0.0
    %492 = vmatprep.subr.mxu0 0.0
    %493 = vmatpush1.msra.mxu0 0.0
    %494 = vmatprep.subr.mxu0 0.0
    %495 = vmatpush1.msra.mxu0 0.0
    %496 = vmatprep.subr.mxu0 0.0
    %497 = vmatpush1.msra.mxu0 0.0
    %498 = vmatprep.subr.mxu0 0.0
    %499 = vmatpush1.msra.mxu0 0.0
    %500 = vmatprep.subr.mxu0 0.0
    %501 = vmatpush1.msra.mxu0 0.0
    %502 = vmatprep.subr.mxu0 0.0
    %503 = vmatpush1.msra.mxu0 0.0
    %504 = vmatprep.subr.mxu0 0.0
    %505 = vmatpush1.msra.mxu0 0.0
    %v506 = vand.u32 %v128, 4294901760
    %v507 = vsub.f32 %v128, %v506
    %508 = vmatprep.mubr.f32.mxu0 %v507
    %v509 = vand.u32 %v124, 4294901760
    %v510 = vsub.f32 %v124, %v509
    %511 = vmatmul.mubr.f32.gmra.mrb[0].mxu0 %v510
    %v512 = vpop.f32.mrb[0].mxu0
    %v513 = vadd.f32 %v399, %v512
    %v514 = vpop.f32.mrb[0].mxu0
    %515 = vdwg.mxu0
    %516 = vmatprep.subr.mxu0 0.0
    %v517 = vand.u32 %v20, 4294901760
    %518 = vmatpush1.msra.mxu0 %v517
    %519 = vmatprep.subr.mxu0 0.0
    %v520 = vand.u32 %v21, 4294901760
    %521 = vmatpush1.msra.mxu0 %v520
    %522 = vmatprep.subr.mxu0 0.0
    %v523 = vand.u32 %v22, 4294901760
    %524 = vmatpush1.msra.mxu0 %v523
    %525 = vmatprep.subr.mxu0 0.0
    %v526 = vand.u32 %v23, 4294901760
    %527 = vmatpush1.msra.mxu0 %v526
    %528 = vmatprep.subr.mxu0 0.0
    %v529 = vand.u32 %v24, 4294901760
    %530 = vmatpush1.msra.mxu0 %v529
    %531 = vmatprep.subr.mxu0 0.0
    %v532 = vand.u32 %v25, 4294901760
    %533 = vmatpush1.msra.mxu0 %v532
    %534 = vmatprep.subr.mxu0 0.0
    %v535 = vand.u32 %v26, 4294901760
    %536 = vmatpush1.msra.mxu0 %v535
    %537 = vmatprep.subr.mxu0 0.0
    %v538 = vand.u32 %v27, 4294901760
    %539 = vmatpush1.msra.mxu0 %v538
    %540 = vmatprep.subr.mxu0 0.0
    %v541 = vand.u32 %v28, 4294901760
    %542 = vmatpush1.msra.mxu0 %v541
    %543 = vmatprep.subr.mxu0 0.0
    %v544 = vand.u32 %v29, 4294901760
    %545 = vmatpush1.msra.mxu0 %v544
    %546 = vmatprep.subr.mxu0 0.0
    %v547 = vand.u32 %v30, 4294901760
    %548 = vmatpush1.msra.mxu0 %v547
    %549 = vmatprep.subr.mxu0 0.0
    %v550 = vand.u32 %v31, 4294901760
    %551 = vmatpush1.msra.mxu0 %v550
    %552 = vmatprep.subr.mxu0 0.0
    %v553 = vand.u32 %v32, 4294901760
    %554 = vmatpush1.msra.mxu0 %v553
    %555 = vmatprep.subr.mxu0 0.0
    %v556 = vand.u32 %v33, 4294901760
    %557 = vmatpush1.msra.mxu0 %v556
    %558 = vmatprep.subr.mxu0 0.0
    %v559 = vand.u32 %v34, 4294901760
    %560 = vmatpush1.msra.mxu0 %v559
    %561 = vmatprep.subr.mxu0 0.0
    %v562 = vand.u32 %v35, 4294901760
    %563 = vmatpush1.msra.mxu0 %v562
    %564 = vmatprep.subr.mxu0 0.0
    %v565 = vand.u32 %v36, 4294901760
    %566 = vmatpush1.msra.mxu0 %v565
    %567 = vmatprep.subr.mxu0 0.0
    %v568 = vand.u32 %v37, 4294901760
    %569 = vmatpush1.msra.mxu0 %v568
    %570 = vmatprep.subr.mxu0 0.0
    %v571 = vand.u32 %v38, 4294901760
    %572 = vmatpush1.msra.mxu0 %v571
    %573 = vmatprep.subr.mxu0 0.0
    %v574 = vand.u32 %v39, 4294901760
    %575 = vmatpush1.msra.mxu0 %v574
    %576 = vmatprep.subr.mxu0 0.0
    %577 = vmatpush1.msra.mxu0 0.0
    %578 = vmatprep.subr.mxu0 0.0
    %579 = vmatpush1.msra.mxu0 0.0
    %580 = vmatprep.subr.mxu0 0.0
    %581 = vmatpush1.msra.mxu0 0.0
    %582 = vmatprep.subr.mxu0 0.0
    %583 = vmatpush1.msra.mxu0 0.0
    %584 = vmatprep.subr.mxu0 0.0
    %585 = vmatpush1.msra.mxu0 0.0
    %586 = vmatprep.subr.mxu0 0.0
    %587 = vmatpush1.msra.mxu0 0.0
    %588 = vmatprep.subr.mxu0 0.0
    %589 = vmatpush1.msra.mxu0 0.0
    %590 = vmatprep.subr.mxu0 0.0
    %591 = vmatpush1.msra.mxu0 0.0
    %592 = vmatprep.subr.mxu0 0.0
    %593 = vmatpush1.msra.mxu0 0.0
    %594 = vmatprep.subr.mxu0 0.0
    %595 = vmatpush1.msra.mxu0 0.0
    %596 = vmatprep.subr.mxu0 0.0
    %597 = vmatpush1.msra.mxu0 0.0
    %598 = vmatprep.subr.mxu0 0.0
    %599 = vmatpush1.msra.mxu0 0.0
    %v600 = vand.u32 %v128, 4294901760
    %v601 = vsub.f32 %v128, %v600
    %v602 = vand.u32 %v601, 4294901760
    %603 = vmatprep.mubr.f32.mxu0 %v602
    %v604 = vand.u32 %v124, 4294901760
    %v605 = vsub.f32 %v124, %v604
    %v606 = vand.u32 %v605, 4294901760
    %607 = vmatmul.mubr.f32.gmra.mrb[0].mxu0 %v606
    %v608 = vpop.f32.mrb[0].mxu0
    %v609 = vadd.f32 %v513, %v608
    %v610 = vpop.f32.mrb[0].mxu0
    %611 = vdwg.mxu0
    %612 = vmatprep.subr.mxu0 0.0
    %v613 = vand.u32 %v20, 4294901760
    %v614 = vsub.f32 %v20, %v613
    %v615 = vand.u32 %v614, 4294901760
    %616 = vmatpush1.msra.mxu0 %v615
    %617 = vmatprep.subr.mxu0 0.0
    %v618 = vand.u32 %v21, 4294901760
    %v619 = vsub.f32 %v21, %v618
    %v620 = vand.u32 %v619, 4294901760
    %621 = vmatpush1.msra.mxu0 %v620
    %622 = vmatprep.subr.mxu0 0.0
    %v623 = vand.u32 %v22, 4294901760
    %v624 = vsub.f32 %v22, %v623
    %v625 = vand.u32 %v624, 4294901760
    %626 = vmatpush1.msra.mxu0 %v625
    %627 = vmatprep.subr.mxu0 0.0
    %v628 = vand.u32 %v23, 4294901760
    %v629 = vsub.f32 %v23, %v628
    %v630 = vand.u32 %v629, 4294901760
    %631 = vmatpush1.msra.mxu0 %v630
    %632 = vmatprep.subr.mxu0 0.0
    %v633 = vand.u32 %v24, 4294901760
    %v634 = vsub.f32 %v24, %v633
    %v635 = vand.u32 %v634, 4294901760
    %636 = vmatpush1.msra.mxu0 %v635
    %637 = vmatprep.subr.mxu0 0.0
    %v638 = vand.u32 %v25, 4294901760
    %v639 = vsub.f32 %v25, %v638
    %v640 = vand.u32 %v639, 4294901760
    %641 = vmatpush1.msra.mxu0 %v640
    %642 = vmatprep.subr.mxu0 0.0
    %v643 = vand.u32 %v26, 4294901760
    %v644 = vsub.f32 %v26, %v643
    %v645 = vand.u32 %v644, 4294901760
    %646 = vmatpush1.msra.mxu0 %v645
    %647 = vmatprep.subr.mxu0 0.0
    %v648 = vand.u32 %v27, 4294901760
    %v649 = vsub.f32 %v27, %v648
    %v650 = vand.u32 %v649, 4294901760
    %651 = vmatpush1.msra.mxu0 %v650
    %652 = vmatprep.subr.mxu0 0.0
    %v653 = vand.u32 %v28, 4294901760
    %v654 = vsub.f32 %v28, %v653
    %v655 = vand.u32 %v654, 4294901760
    %656 = vmatpush1.msra.mxu0 %v655
    %657 = vmatprep.subr.mxu0 0.0
    %v658 = vand.u32 %v29, 4294901760
    %v659 = vsub.f32 %v29, %v658
    %v660 = vand.u32 %v659, 4294901760
    %661 = vmatpush1.msra.mxu0 %v660
    %662 = vmatprep.subr.mxu0 0.0
    %v663 = vand.u32 %v30, 4294901760
    %v664 = vsub.f32 %v30, %v663
    %v665 = vand.u32 %v664, 4294901760
    %666 = vmatpush1.msra.mxu0 %v665
    %667 = vmatprep.subr.mxu0 0.0
    %v668 = vand.u32 %v31, 4294901760
    %v669 = vsub.f32 %v31, %v668
    %v670 = vand.u32 %v669, 4294901760
    %671 = vmatpush1.msra.mxu0 %v670
    %672 = vmatprep.subr.mxu0 0.0
    %v673 = vand.u32 %v32, 4294901760
    %v674 = vsub.f32 %v32, %v673
    %v675 = vand.u32 %v674, 4294901760
    %676 = vmatpush1.msra.mxu0 %v675
    %677 = vmatprep.subr.mxu0 0.0
    %v678 = vand.u32 %v33, 4294901760
    %v679 = vsub.f32 %v33, %v678
    %v680 = vand.u32 %v679, 4294901760
    %681 = vmatpush1.msra.mxu0 %v680
    %682 = vmatprep.subr.mxu0 0.0
    %v683 = vand.u32 %v34, 4294901760
    %v684 = vsub.f32 %v34, %v683
    %v685 = vand.u32 %v684, 4294901760
    %686 = vmatpush1.msra.mxu0 %v685
    %687 = vmatprep.subr.mxu0 0.0
    %v688 = vand.u32 %v35, 4294901760
    %v689 = vsub.f32 %v35, %v688
    %v690 = vand.u32 %v689, 4294901760
    %691 = vmatpush1.msra.mxu0 %v690
    %692 = vmatprep.subr.mxu0 0.0
    %v693 = vand.u32 %v36, 4294901760
    %v694 = vsub.f32 %v36, %v693
    %v695 = vand.u32 %v694, 4294901760
    %696 = vmatpush1.msra.mxu0 %v695
    %697 = vmatprep.subr.mxu0 0.0
    %v698 = vand.u32 %v37, 4294901760
    %v699 = vsub.f32 %v37, %v698
    %v700 = vand.u32 %v699, 4294901760
    %701 = vmatpush1.msra.mxu0 %v700
    %702 = vmatprep.subr.mxu0 0.0
    %v703 = vand.u32 %v38, 4294901760
    %v704 = vsub.f32 %v38, %v703
    %v705 = vand.u32 %v704, 4294901760
    %706 = vmatpush1.msra.mxu0 %v705
    %707 = vmatprep.subr.mxu0 0.0
    %v708 = vand.u32 %v39, 4294901760
    %v709 = vsub.f32 %v39, %v708
    %v710 = vand.u32 %v709, 4294901760
    %711 = vmatpush1.msra.mxu0 %v710
    %712 = vmatprep.subr.mxu0 0.0
    %713 = vmatpush1.msra.mxu0 0.0
    %714 = vmatprep.subr.mxu0 0.0
    %715 = vmatpush1.msra.mxu0 0.0
    %716 = vmatprep.subr.mxu0 0.0
    %717 = vmatpush1.msra.mxu0 0.0
    %718 = vmatprep.subr.mxu0 0.0
    %719 = vmatpush1.msra.mxu0 0.0
    %720 = vmatprep.subr.mxu0 0.0
    %721 = vmatpush1.msra.mxu0 0.0
    %722 = vmatprep.subr.mxu0 0.0
    %723 = vmatpush1.msra.mxu0 0.0
    %724 = vmatprep.subr.mxu0 0.0
    %725 = vmatpush1.msra.mxu0 0.0
    %726 = vmatprep.subr.mxu0 0.0
    %727 = vmatpush1.msra.mxu0 0.0
    %728 = vmatprep.subr.mxu0 0.0
    %729 = vmatpush1.msra.mxu0 0.0
    %730 = vmatprep.subr.mxu0 0.0
    %731 = vmatpush1.msra.mxu0 0.0
    %732 = vmatprep.subr.mxu0 0.0
    %733 = vmatpush1.msra.mxu0 0.0
    %734 = vmatprep.subr.mxu0 0.0
    %735 = vmatpush1.msra.mxu0 0.0
    %v736 = vand.u32 %v128, 4294901760
    %737 = vmatprep.mubr.f32.mxu0 %v736
    %v738 = vand.u32 %v124, 4294901760
    %739 = vmatmul.mubr.f32.gmra.mrb[0].mxu0 %v738
    %v740 = vpop.f32.mrb[0].mxu0
    %v741 = vadd.f32 %v609, %v740
    %v742 = vpop.f32.mrb[0].mxu0
    %743 = vdwg.mxu0
    %744 = vmatprep.subr.mxu0 0.0
    %v745 = vand.u32 %v20, 4294901760
    %746 = vmatpush1.msra.mxu0 %v745
    %747 = vmatprep.subr.mxu0 0.0
    %v748 = vand.u32 %v21, 4294901760
    %749 = vmatpush1.msra.mxu0 %v748
    %750 = vmatprep.subr.mxu0 0.0
    %v751 = vand.u32 %v22, 4294901760
    %752 = vmatpush1.msra.mxu0 %v751
    %753 = vmatprep.subr.mxu0 0.0
    %v754 = vand.u32 %v23, 4294901760
    %755 = vmatpush1.msra.mxu0 %v754
    %756 = vmatprep.subr.mxu0 0.0
    %v757 = vand.u32 %v24, 4294901760
    %758 = vmatpush1.msra.mxu0 %v757
    %759 = vmatprep.subr.mxu0 0.0
    %v760 = vand.u32 %v25, 4294901760
    %761 = vmatpush1.msra.mxu0 %v760
    %762 = vmatprep.subr.mxu0 0.0
    %v763 = vand.u32 %v26, 4294901760
    %764 = vmatpush1.msra.mxu0 %v763
    %765 = vmatprep.subr.mxu0 0.0
    %v766 = vand.u32 %v27, 4294901760
    %767 = vmatpush1.msra.mxu0 %v766
    %768 = vmatprep.subr.mxu0 0.0
    %v769 = vand.u32 %v28, 4294901760
    %770 = vmatpush1.msra.mxu0 %v769
    %771 = vmatprep.subr.mxu0 0.0
    %v772 = vand.u32 %v29, 4294901760
    %773 = vmatpush1.msra.mxu0 %v772
    %774 = vmatprep.subr.mxu0 0.0
    %v775 = vand.u32 %v30, 4294901760
    %776 = vmatpush1.msra.mxu0 %v775
    %777 = vmatprep.subr.mxu0 0.0
    %v778 = vand.u32 %v31, 4294901760
    %779 = vmatpush1.msra.mxu0 %v778
    %780 = vmatprep.subr.mxu0 0.0
    %v781 = vand.u32 %v32, 4294901760
    %782 = vmatpush1.msra.mxu0 %v781
    %783 = vmatprep.subr.mxu0 0.0
    %v784 = vand.u32 %v33, 4294901760
    %785 = vmatpush1.msra.mxu0 %v784
    %786 = vmatprep.subr.mxu0 0.0
    %v787 = vand.u32 %v34, 4294901760
    %788 = vmatpush1.msra.mxu0 %v787
    %789 = vmatprep.subr.mxu0 0.0
    %v790 = vand.u32 %v35, 4294901760
    %791 = vmatpush1.msra.mxu0 %v790
    %792 = vmatprep.subr.mxu0 0.0
    %v793 = vand.u32 %v36, 4294901760
    %794 = vmatpush1.msra.mxu0 %v793
    %795 = vmatprep.subr.mxu0 0.0
    %v796 = vand.u32 %v37, 4294901760
    %797 = vmatpush1.msra.mxu0 %v796
    %798 = vmatprep.subr.mxu0 0.0
    %v799 = vand.u32 %v38, 4294901760
    %800 = vmatpush1.msra.mxu0 %v799
    %801 = vmatprep.subr.mxu0 0.0
    %v802 = vand.u32 %v39, 4294901760
    %803 = vmatpush1.msra.mxu0 %v802
    %804 = vmatprep.subr.mxu0 0.0
    %805 = vmatpush1.msra.mxu0 0.0
    %806 = vmatprep.subr.mxu0 0.0
    %807 = vmatpush1.msra.mxu0 0.0
    %808 = vmatprep.subr.mxu0 0.0
    %809 = vmatpush1.msra.mxu0 0.0
    %810 = vmatprep.subr.mxu0 0.0
    %811 = vmatpush1.msra.mxu0 0.0
    %812 = vmatprep.subr.mxu0 0.0
    %813 = vmatpush1.msra.mxu0 0.0
    %814 = vmatprep.subr.mxu0 0.0
    %815 = vmatpush1.msra.mxu0 0.0
    %816 = vmatprep.subr.mxu0 0.0
    %817 = vmatpush1.msra.mxu0 0.0
    %818 = vmatprep.subr.mxu0 0.0
    %819 = vmatpush1.msra.mxu0 0.0
    %820 = vmatprep.subr.mxu0 0.0
    %821 = vmatpush1.msra.mxu0 0.0
    %822 = vmatprep.subr.mxu0 0.0
    %823 = vmatpush1.msra.mxu0 0.0
    %824 = vmatprep.subr.mxu0 0.0
    %825 = vmatpush1.msra.mxu0 0.0
    %826 = vmatprep.subr.mxu0 0.0
    %827 = vmatpush1.msra.mxu0 0.0
    %v828 = vand.u32 %v128, 4294901760
    %829 = vmatprep.mubr.f32.mxu0 %v828
    %v830 = vand.u32 %v124, 4294901760
    %831 = vmatmul.mubr.f32.gmra.mrb[0].mxu0 %v830
    %v832 = vpop.f32.mrb[0].mxu0
    %v833 = vadd.f32 %v741, %v832
    %v834 = vpop.f32.mrb[0].mxu0
    %835 = vdwg.mxu0
    %836 = vmatprep.subr.mxu0 0.0
    %v837 = vand.u32 %v40, 4294901760
    %838 = vmatpush1.msra.mxu0 %v837
    %839 = vmatprep.subr.mxu0 0.0
    %v840 = vand.u32 %v41, 4294901760
    %841 = vmatpush1.msra.mxu0 %v840
    %842 = vmatprep.subr.mxu0 0.0
    %v843 = vand.u32 %v42, 4294901760
    %844 = vmatpush1.msra.mxu0 %v843
    %845 = vmatprep.subr.mxu0 0.0
    %v846 = vand.u32 %v43, 4294901760
    %847 = vmatpush1.msra.mxu0 %v846
    %848 = vmatprep.subr.mxu0 0.0
    %v849 = vand.u32 %v44, 4294901760
    %850 = vmatpush1.msra.mxu0 %v849
    %851 = vmatprep.subr.mxu0 0.0
    %v852 = vand.u32 %v45, 4294901760
    %853 = vmatpush1.msra.mxu0 %v852
    %854 = vmatprep.subr.mxu0 0.0
    %v855 = vand.u32 %v46, 4294901760
    %856 = vmatpush1.msra.mxu0 %v855
    %857 = vmatprep.subr.mxu0 0.0
    %v858 = vand.u32 %v47, 4294901760
    %859 = vmatpush1.msra.mxu0 %v858
    %860 = vmatprep.subr.mxu0 0.0
    %v861 = vand.u32 %v48, 4294901760
    %862 = vmatpush1.msra.mxu0 %v861
    %863 = vmatprep.subr.mxu0 0.0
    %v864 = vand.u32 %v49, 4294901760
    %865 = vmatpush1.msra.mxu0 %v864
    %866 = vmatprep.subr.mxu0 0.0
    %v867 = vand.u32 %v50, 4294901760
    %868 = vmatpush1.msra.mxu0 %v867
    %869 = vmatprep.subr.mxu0 0.0
    %v870 = vand.u32 %v51, 4294901760
    %871 = vmatpush1.msra.mxu0 %v870
    %872 = vmatprep.subr.mxu0 0.0
    %v873 = vand.u32 %v52, 4294901760
    %874 = vmatpush1.msra.mxu0 %v873
    %875 = vmatprep.subr.mxu0 0.0
    %v876 = vand.u32 %v53, 4294901760
    %877 = vmatpush1.msra.mxu0 %v876
    %878 = vmatprep.subr.mxu0 0.0
    %v879 = vand.u32 %v54, 4294901760
    %880 = vmatpush1.msra.mxu0 %v879
    %881 = vmatprep.subr.mxu0 0.0
    %v882 = vand.u32 %v55, 4294901760
    %883 = vmatpush1.msra.mxu0 %v882
    %884 = vmatprep.subr.mxu0 0.0
    %v885 = vand.u32 %v56, 4294901760
    %886 = vmatpush1.msra.mxu0 %v885
    %887 = vmatprep.subr.mxu0 0.0
    %v888 = vand.u32 %v57, 4294901760
    %889 = vmatpush1.msra.mxu0 %v888
    %890 = vmatprep.subr.mxu0 0.0
    %v891 = vand.u32 %v58, 4294901760
    %892 = vmatpush1.msra.mxu0 %v891
    %893 = vmatprep.subr.mxu0 0.0
    %v894 = vand.u32 %v59, 4294901760
    %895 = vmatpush1.msra.mxu0 %v894
    %896 = vmatprep.subr.mxu0 0.0
    %897 = vmatpush1.msra.mxu0 0.0
    %898 = vmatprep.subr.mxu0 0.0
    %899 = vmatpush1.msra.mxu0 0.0
    %900 = vmatprep.subr.mxu0 0.0
    %901 = vmatpush1.msra.mxu0 0.0
    %902 = vmatprep.subr.mxu0 0.0
    %903 = vmatpush1.msra.mxu0 0.0
    %904 = vmatprep.subr.mxu0 0.0
    %905 = vmatpush1.msra.mxu0 0.0
    %906 = vmatprep.subr.mxu0 0.0
    %907 = vmatpush1.msra.mxu0 0.0
    %908 = vmatprep.subr.mxu0 0.0
    %909 = vmatpush1.msra.mxu0 0.0
    %910 = vmatprep.subr.mxu0 0.0
    %911 = vmatpush1.msra.mxu0 0.0
    %912 = vmatprep.subr.mxu0 0.0
    %913 = vmatpush1.msra.mxu0 0.0
    %914 = vmatprep.subr.mxu0 0.0
    %915 = vmatpush1.msra.mxu0 0.0
    %916 = vmatprep.subr.mxu0 0.0
    %917 = vmatpush1.msra.mxu0 0.0
    %918 = vmatprep.subr.mxu0 0.0
    %919 = vmatpush1.msra.mxu0 0.0
    %v920 = vand.u32 %v128, 4294901760
    %v921 = vsub.f32 %v128, %v920
    %v922 = vand.u32 %v921, 4294901760
    %v923 = vsub.f32 %v921, %v922
    %v924 = vand.u32 %v923, 4294901760
    %925 = vmatprep.mubr.f32.mxu0 %v924
    %v926 = vand.u32 %v124, 4294901760
    %v927 = vsub.f32 %v124, %v926
    %v928 = vand.u32 %v927, 4294901760
    %v929 = vsub.f32 %v927, %v928
    %v930 = vand.u32 %v929, 4294901760
    %931 = vmatmul.mubr.f32.gmra.mrb[0].mxu0 %v930
    %v932 = vpop.f32.mrb[0].mxu0
    %v933 = vadd.f32 0.0, %v932
    %v934 = vpop.f32.mrb[0].mxu0
    %935 = vdwg.mxu0
    %936 = vmatprep.subr.mxu0 0.0
    %v937 = vand.u32 %v40, 4294901760
    %v938 = vsub.f32 %v40, %v937
    %v939 = vand.u32 %v938, 4294901760
    %v940 = vsub.f32 %v938, %v939
    %v941 = vand.u32 %v940, 4294901760
    %942 = vmatpush1.msra.mxu0 %v941
    %943 = vmatprep.subr.mxu0 0.0
    %v944 = vand.u32 %v41, 4294901760
    %v945 = vsub.f32 %v41, %v944
    %v946 = vand.u32 %v945, 4294901760
    %v947 = vsub.f32 %v945, %v946
    %v948 = vand.u32 %v947, 4294901760
    %949 = vmatpush1.msra.mxu0 %v948
    %950 = vmatprep.subr.mxu0 0.0
    %v951 = vand.u32 %v42, 4294901760
    %v952 = vsub.f32 %v42, %v951
    %v953 = vand.u32 %v952, 4294901760
    %v954 = vsub.f32 %v952, %v953
    %v955 = vand.u32 %v954, 4294901760
    %956 = vmatpush1.msra.mxu0 %v955
    %957 = vmatprep.subr.mxu0 0.0
    %v958 = vand.u32 %v43, 4294901760
    %v959 = vsub.f32 %v43, %v958
    %v960 = vand.u32 %v959, 4294901760
    %v961 = vsub.f32 %v959, %v960
    %v962 = vand.u32 %v961, 4294901760
    %963 = vmatpush1.msra.mxu0 %v962
    %964 = vmatprep.subr.mxu0 0.0
    %v965 = vand.u32 %v44, 4294901760
    %v966 = vsub.f32 %v44, %v965
    %v967 = vand.u32 %v966, 4294901760
    %v968 = vsub.f32 %v966, %v967
    %v969 = vand.u32 %v968, 4294901760
    %970 = vmatpush1.msra.mxu0 %v969
    %971 = vmatprep.subr.mxu0 0.0
    %v972 = vand.u32 %v45, 4294901760
    %v973 = vsub.f32 %v45, %v972
    %v974 = vand.u32 %v973, 4294901760
    %v975 = vsub.f32 %v973, %v974
    %v976 = vand.u32 %v975, 4294901760
    %977 = vmatpush1.msra.mxu0 %v976
    %978 = vmatprep.subr.mxu0 0.0
    %v979 = vand.u32 %v46, 4294901760
    %v980 = vsub.f32 %v46, %v979
    %v981 = vand.u32 %v980, 4294901760
    %v982 = vsub.f32 %v980, %v981
    %v983 = vand.u32 %v982, 4294901760
    %984 = vmatpush1.msra.mxu0 %v983
    %985 = vmatprep.subr.mxu0 0.0
    %v986 = vand.u32 %v47, 4294901760
    %v987 = vsub.f32 %v47, %v986
    %v988 = vand.u32 %v987, 4294901760
    %v989 = vsub.f32 %v987, %v988
    %v990 = vand.u32 %v989, 4294901760
    %991 = vmatpush1.msra.mxu0 %v990
    %992 = vmatprep.subr.mxu0 0.0
    %v993 = vand.u32 %v48, 4294901760
    %v994 = vsub.f32 %v48, %v993
    %v995 = vand.u32 %v994, 4294901760
    %v996 = vsub.f32 %v994, %v995
    %v997 = vand.u32 %v996, 4294901760
    %998 = vmatpush1.msra.mxu0 %v997
    %999 = vmatprep.subr.mxu0 0.0
    %v1000 = vand.u32 %v49, 4294901760
    %v1001 = vsub.f32 %v49, %v1000
    %v1002 = vand.u32 %v1001, 4294901760
    %v1003 = vsub.f32 %v1001, %v1002
    %v1004 = vand.u32 %v1003, 4294901760
    %1005 = vmatpush1.msra.mxu0 %v1004
    %1006 = vmatprep.subr.mxu0 0.0
    %v1007 = vand.u32 %v50, 4294901760
    %v1008 = vsub.f32 %v50, %v1007
    %v1009 = vand.u32 %v1008, 4294901760
    %v1010 = vsub.f32 %v1008, %v1009
    %v1011 = vand.u32 %v1010, 4294901760
    %1012 = vmatpush1.msra.mxu0 %v1011
    %1013 = vmatprep.subr.mxu0 0.0
    %v1014 = vand.u32 %v51, 4294901760
    %v1015 = vsub.f32 %v51, %v1014
    %v1016 = vand.u32 %v1015, 4294901760
    %v1017 = vsub.f32 %v1015, %v1016
    %v1018 = vand.u32 %v1017, 4294901760
    %1019 = vmatpush1.msra.mxu0 %v1018
    %1020 = vmatprep.subr.mxu0 0.0
    %v1021 = vand.u32 %v52, 4294901760
    %v1022 = vsub.f32 %v52, %v1021
    %v1023 = vand.u32 %v1022, 4294901760
    %v1024 = vsub.f32 %v1022, %v1023
    %v1025 = vand.u32 %v1024, 4294901760
    %1026 = vmatpush1.msra.mxu0 %v1025
    %1027 = vmatprep.subr.mxu0 0.0
    %v1028 = vand.u32 %v53, 4294901760
    %v1029 = vsub.f32 %v53, %v1028
    %v1030 = vand.u32 %v1029, 4294901760
    %v1031 = vsub.f32 %v1029, %v1030
    %v1032 = vand.u32 %v1031, 4294901760
    %1033 = vmatpush1.msra.mxu0 %v1032
    %1034 = vmatprep.subr.mxu0 0.0
    %v1035 = vand.u32 %v54, 4294901760
    %v1036 = vsub.f32 %v54, %v1035
    %v1037 = vand.u32 %v1036, 4294901760
    %v1038 = vsub.f32 %v1036, %v1037
    %v1039 = vand.u32 %v1038, 4294901760
    %1040 = vmatpush1.msra.mxu0 %v1039
    %1041 = vmatprep.subr.mxu0 0.0
    %v1042 = vand.u32 %v55, 4294901760
    %v1043 = vsub.f32 %v55, %v1042
    %v1044 = vand.u32 %v1043, 4294901760
    %v1045 = vsub.f32 %v1043, %v1044
    %v1046 = vand.u32 %v1045, 4294901760
    %1047 = vmatpush1.msra.mxu0 %v1046
    %1048 = vmatprep.subr.mxu0 0.0
    %v1049 = vand.u32 %v56, 4294901760
    %v1050 = vsub.f32 %v56, %v1049
    %v1051 = vand.u32 %v1050, 4294901760
    %v1052 = vsub.f32 %v1050, %v1051
    %v1053 = vand.u32 %v1052, 4294901760
    %1054 = vmatpush1.msra.mxu0 %v1053
    %1055 = vmatprep.subr.mxu0 0.0
    %v1056 = vand.u32 %v57, 4294901760
    %v1057 = vsub.f32 %v57, %v1056
    %v1058 = vand.u32 %v1057, 4294901760
    %v1059 = vsub.f32 %v1057, %v1058
    %v1060 = vand.u32 %v1059, 4294901760
    %1061 = vmatpush1.msra.mxu0 %v1060
    %1062 = vmatprep.subr.mxu0 0.0
    %v1063 = vand.u32 %v58, 4294901760
    %v1064 = vsub.f32 %v58, %v1063
    %v1065 = vand.u32 %v1064, 4294901760
    %v1066 = vsub.f32 %v1064, %v1065
    %v1067 = vand.u32 %v1066, 4294901760
    %1068 = vmatpush1.msra.mxu0 %v1067
    %1069 = vmatprep.subr.mxu0 0.0
    %v1070 = vand.u32 %v59, 4294901760
    %v1071 = vsub.f32 %v59, %v1070
    %v1072 = vand.u32 %v1071, 4294901760
    %v1073 = vsub.f32 %v1071, %v1072
    %v1074 = vand.u32 %v1073, 4294901760
    %1075 = vmatpush1.msra.mxu0 %v1074
    %1076 = vmatprep.subr.mxu0 0.0
    %1077 = vmatpush1.msra.mxu0 0.0
    %1078 = vmatprep.subr.mxu0 0.0
    %1079 = vmatpush1.msra.mxu0 0.0
    %1080 = vmatprep.subr.mxu0 0.0
    %1081 = vmatpush1.msra.mxu0 0.0
    %1082 = vmatprep.subr.mxu0 0.0
    %1083 = vmatpush1.msra.mxu0 0.0
    %1084 = vmatprep.subr.mxu0 0.0
    %1085 = vmatpush1.msra.mxu0 0.0
    %1086 = vmatprep.subr.mxu0 0.0
    %1087 = vmatpush1.msra.mxu0 0.0
    %1088 = vmatprep.subr.mxu0 0.0
    %1089 = vmatpush1.msra.mxu0 0.0
    %1090 = vmatprep.subr.mxu0 0.0
    %1091 = vmatpush1.msra.mxu0 0.0
    %1092 = vmatprep.subr.mxu0 0.0
    %1093 = vmatpush1.msra.mxu0 0.0
    %1094 = vmatprep.subr.mxu0 0.0
    %1095 = vmatpush1.msra.mxu0 0.0
    %1096 = vmatprep.subr.mxu0 0.0
    %1097 = vmatpush1.msra.mxu0 0.0
    %1098 = vmatprep.subr.mxu0 0.0
    %1099 = vmatpush1.msra.mxu0 0.0
    %v1100 = vand.u32 %v128, 4294901760
    %1101 = vmatprep.mubr.f32.mxu0 %v1100
    %v1102 = vand.u32 %v124, 4294901760
    %1103 = vmatmul.mubr.f32.gmra.mrb[0].mxu0 %v1102
    %v1104 = vpop.f32.mrb[0].mxu0
    %v1105 = vadd.f32 %v933, %v1104
    %v1106 = vpop.f32.mrb[0].mxu0
    %1107 = vdwg.mxu0
    %1108 = vmatprep.subr.mxu0 0.0
    %v1109 = vand.u32 %v40, 4294901760
    %v1110 = vsub.f32 %v40, %v1109
    %1111 = vmatpush1.msra.mxu0 %v1110
    %1112 = vmatprep.subr.mxu0 0.0
    %v1113 = vand.u32 %v41, 4294901760
    %v1114 = vsub.f32 %v41, %v1113
    %1115 = vmatpush1.msra.mxu0 %v1114
    %1116 = vmatprep.subr.mxu0 0.0
    %v1117 = vand.u32 %v42, 4294901760
    %v1118 = vsub.f32 %v42, %v1117
    %1119 = vmatpush1.msra.mxu0 %v1118
    %1120 = vmatprep.subr.mxu0 0.0
    %v1121 = vand.u32 %v43, 4294901760
    %v1122 = vsub.f32 %v43, %v1121
    %1123 = vmatpush1.msra.mxu0 %v1122
    %1124 = vmatprep.subr.mxu0 0.0
    %v1125 = vand.u32 %v44, 4294901760
    %v1126 = vsub.f32 %v44, %v1125
    %1127 = vmatpush1.msra.mxu0 %v1126
    %1128 = vmatprep.subr.mxu0 0.0
    %v1129 = vand.u32 %v45, 4294901760
    %v1130 = vsub.f32 %v45, %v1129
    %1131 = vmatpush1.msra.mxu0 %v1130
    %1132 = vmatprep.subr.mxu0 0.0
    %v1133 = vand.u32 %v46, 4294901760
    %v1134 = vsub.f32 %v46, %v1133
    %1135 = vmatpush1.msra.mxu0 %v1134
    %1136 = vmatprep.subr.mxu0 0.0
    %v1137 = vand.u32 %v47, 4294901760
    %v1138 = vsub.f32 %v47, %v1137
    %1139 = vmatpush1.msra.mxu0 %v1138
    %1140 = vmatprep.subr.mxu0 0.0
    %v1141 = vand.u32 %v48, 4294901760
    %v1142 = vsub.f32 %v48, %v1141
    %1143 = vmatpush1.msra.mxu0 %v1142
    %1144 = vmatprep.subr.mxu0 0.0
    %v1145 = vand.u32 %v49, 4294901760
    %v1146 = vsub.f32 %v49, %v1145
    %1147 = vmatpush1.msra.mxu0 %v1146
    %1148 = vmatprep.subr.mxu0 0.0
    %v1149 = vand.u32 %v50, 4294901760
    %v1150 = vsub.f32 %v50, %v1149
    %1151 = vmatpush1.msra.mxu0 %v1150
    %1152 = vmatprep.subr.mxu0 0.0
    %v1153 = vand.u32 %v51, 4294901760
    %v1154 = vsub.f32 %v51, %v1153
    %1155 = vmatpush1.msra.mxu0 %v1154
    %1156 = vmatprep.subr.mxu0 0.0
    %v1157 = vand.u32 %v52, 4294901760
    %v1158 = vsub.f32 %v52, %v1157
    %1159 = vmatpush1.msra.mxu0 %v1158
    %1160 = vmatprep.subr.mxu0 0.0
    %v1161 = vand.u32 %v53, 4294901760
    %v1162 = vsub.f32 %v53, %v1161
    %1163 = vmatpush1.msra.mxu0 %v1162
    %1164 = vmatprep.subr.mxu0 0.0
    %v1165 = vand.u32 %v54, 4294901760
    %v1166 = vsub.f32 %v54, %v1165
    %1167 = vmatpush1.msra.mxu0 %v1166
    %1168 = vmatprep.subr.mxu0 0.0
    %v1169 = vand.u32 %v55, 4294901760
    %v1170 = vsub.f32 %v55, %v1169
    %1171 = vmatpush1.msra.mxu0 %v1170
    %1172 = vmatprep.subr.mxu0 0.0
    %v1173 = vand.u32 %v56, 4294901760
    %v1174 = vsub.f32 %v56, %v1173
    %1175 = vmatpush1.msra.mxu0 %v1174
    %1176 = vmatprep.subr.mxu0 0.0
    %v1177 = vand.u32 %v57, 4294901760
    %v1178 = vsub.f32 %v57, %v1177
    %1179 = vmatpush1.msra.mxu0 %v1178
    %1180 = vmatprep.subr.mxu0 0.0
    %v1181 = vand.u32 %v58, 4294901760
    %v1182 = vsub.f32 %v58, %v1181
    %1183 = vmatpush1.msra.mxu0 %v1182
    %1184 = vmatprep.subr.mxu0 0.0
    %v1185 = vand.u32 %v59, 4294901760
    %v1186 = vsub.f32 %v59, %v1185
    %1187 = vmatpush1.msra.mxu0 %v1186
    %1188 = vmatprep.subr.mxu0 0.0
    %1189 = vmatpush1.msra.mxu0 0.0
    %1190 = vmatprep.subr.mxu0 0.0
    %1191 = vmatpush1.msra.mxu0 0.0
    %1192 = vmatprep.subr.mxu0 0.0
    %1193 = vmatpush1.msra.mxu0 0.0
    %1194 = vmatprep.subr.mxu0 0.0
    %1195 = vmatpush1.msra.mxu0 0.0
    %1196 = vmatprep.subr.mxu0 0.0
    %1197 = vmatpush1.msra.mxu0 0.0
    %1198 = vmatprep.subr.mxu0 0.0
    %1199 = vmatpush1.msra.mxu0 0.0
    %1200 = vmatprep.subr.mxu0 0.0
    %1201 = vmatpush1.msra.mxu0 0.0
    %1202 = vmatprep.subr.mxu0 0.0
    %1203 = vmatpush1.msra.mxu0 0.0
    %1204 = vmatprep.subr.mxu0 0.0
    %1205 = vmatpush1.msra.mxu0 0.0
    %1206 = vmatprep.subr.mxu0 0.0
    %1207 = vmatpush1.msra.mxu0 0.0
    %1208 = vmatprep.subr.mxu0 0.0
    %1209 = vmatpush1.msra.mxu0 0.0
    %1210 = vmatprep.subr.mxu0 0.0
    %1211 = vmatpush1.msra.mxu0 0.0
    %v1212 = vand.u32 %v128, 4294901760
    %v1213 = vsub.f32 %v128, %v1212
    %1214 = vmatprep.mubr.f32.mxu0 %v1213
    %v1215 = vand.u32 %v124, 4294901760
    %v1216 = vsub.f32 %v124, %v1215
    %1217 = vmatmul.mubr.f32.gmra.mrb[0].mxu0 %v1216
    %v1218 = vpop.f32.mrb[0].mxu0
    %v1219 = vadd.f32 %v1105, %v1218
    %v1220 = vpop.f32.mrb[0].mxu0
    %1221 = vdwg.mxu0
    %1222 = vmatprep.subr.mxu0 0.0
    %v1223 = vand.u32 %v40, 4294901760
    %1224 = vmatpush1.msra.mxu0 %v1223
    %1225 = vmatprep.subr.mxu0 0.0
    %v1226 = vand.u32 %v41, 4294901760
    %1227 = vmatpush1.msra.mxu0 %v1226
    %1228 = vmatprep.subr.mxu0 0.0
    %v1229 = vand.u32 %v42, 4294901760
    %1230 = vmatpush1.msra.mxu0 %v1229
    %1231 = vmatprep.subr.mxu0 0.0
    %v1232 = vand.u32 %v43, 4294901760
    %1233 = vmatpush1.msra.mxu0 %v1232
    %1234 = vmatprep.subr.mxu0 0.0
    %v1235 = vand.u32 %v44, 4294901760
    %1236 = vmatpush1.msra.mxu0 %v1235
    %1237 = vmatprep.subr.mxu0 0.0
    %v1238 = vand.u32 %v45, 4294901760
    %1239 = vmatpush1.msra.mxu0 %v1238
    %1240 = vmatprep.subr.mxu0 0.0
    %v1241 = vand.u32 %v46, 4294901760
    %1242 = vmatpush1.msra.mxu0 %v1241
    %1243 = vmatprep.subr.mxu0 0.0
    %v1244 = vand.u32 %v47, 4294901760
    %1245 = vmatpush1.msra.mxu0 %v1244
    %1246 = vmatprep.subr.mxu0 0.0
    %v1247 = vand.u32 %v48, 4294901760
    %1248 = vmatpush1.msra.mxu0 %v1247
    %1249 = vmatprep.subr.mxu0 0.0
    %v1250 = vand.u32 %v49, 4294901760
    %1251 = vmatpush1.msra.mxu0 %v1250
    %1252 = vmatprep.subr.mxu0 0.0
    %v1253 = vand.u32 %v50, 4294901760
    %1254 = vmatpush1.msra.mxu0 %v1253
    %1255 = vmatprep.subr.mxu0 0.0
    %v1256 = vand.u32 %v51, 4294901760
    %1257 = vmatpush1.msra.mxu0 %v1256
    %1258 = vmatprep.subr.mxu0 0.0
    %v1259 = vand.u32 %v52, 4294901760
    %1260 = vmatpush1.msra.mxu0 %v1259
    %1261 = vmatprep.subr.mxu0 0.0
    %v1262 = vand.u32 %v53, 4294901760
    %1263 = vmatpush1.msra.mxu0 %v1262
    %1264 = vmatprep.subr.mxu0 0.0
    %v1265 = vand.u32 %v54, 4294901760
    %1266 = vmatpush1.msra.mxu0 %v1265
    %1267 = vmatprep.subr.mxu0 0.0
    %v1268 = vand.u32 %v55, 4294901760
    %1269 = vmatpush1.msra.mxu0 %v1268
    %1270 = vmatprep.subr.mxu0 0.0
    %v1271 = vand.u32 %v56, 4294901760
    %1272 = vmatpush1.msra.mxu0 %v1271
    %1273 = vmatprep.subr.mxu0 0.0
    %v1274 = vand.u32 %v57, 4294901760
    %1275 = vmatpush1.msra.mxu0 %v1274
    %1276 = vmatprep.subr.mxu0 0.0
    %v1277 = vand.u32 %v58, 4294901760
    %1278 = vmatpush1.msra.mxu0 %v1277
    %1279 = vmatprep.subr.mxu0 0.0
    %v1280 = vand.u32 %v59, 4294901760
    %1281 = vmatpush1.msra.mxu0 %v1280
    %1282 = vmatprep.subr.mxu0 0.0
    %1283 = vmatpush1.msra.mxu0 0.0
    %1284 = vmatprep.subr.mxu0 0.0
    %1285 = vmatpush1.msra.mxu0 0.0
    %1286 = vmatprep.subr.mxu0 0.0
    %1287 = vmatpush1.msra.mxu0 0.0
    %1288 = vmatprep.subr.mxu0 0.0
    %1289 = vmatpush1.msra.mxu0 0.0
    %1290 = vmatprep.subr.mxu0 0.0
    %1291 = vmatpush1.msra.mxu0 0.0
    %1292 = vmatprep.subr.mxu0 0.0
    %1293 = vmatpush1.msra.mxu0 0.0
    %1294 = vmatprep.subr.mxu0 0.0
    %1295 = vmatpush1.msra.mxu0 0.0
    %1296 = vmatprep.subr.mxu0 0.0
    %1297 = vmatpush1.msra.mxu0 0.0
    %1298 = vmatprep.subr.mxu0 0.0
    %1299 = vmatpush1.msra.mxu0 0.0
    %1300 = vmatprep.subr.mxu0 0.0
    %1301 = vmatpush1.msra.mxu0 0.0
    %1302 = vmatprep.subr.mxu0 0.0
    %1303 = vmatpush1.msra.mxu0 0.0
    %1304 = vmatprep.subr.mxu0 0.0
    %1305 = vmatpush1.msra.mxu0 0.0
    %v1306 = vand.u32 %v128, 4294901760
    %v1307 = vsub.f32 %v128, %v1306
    %v1308 = vand.u32 %v1307, 4294901760
    %1309 = vmatprep.mubr.f32.mxu0 %v1308
    %v1310 = vand.u32 %v124, 4294901760
    %v1311 = vsub.f32 %v124, %v1310
    %v1312 = vand.u32 %v1311, 4294901760
    %1313 = vmatmul.mubr.f32.gmra.mrb[0].mxu0 %v1312
    %v1314 = vpop.f32.mrb[0].mxu0
    %v1315 = vadd.f32 %v1219, %v1314
    %v1316 = vpop.f32.mrb[0].mxu0
    %1317 = vdwg.mxu0
    %1318 = vmatprep.subr.mxu0 0.0
    %v1319 = vand.u32 %v40, 4294901760
    %v1320 = vsub.f32 %v40, %v1319
    %v1321 = vand.u32 %v1320, 4294901760
    %1322 = vmatpush1.msra.mxu0 %v1321
    %1323 = vmatprep.subr.mxu0 0.0
    %v1324 = vand.u32 %v41, 4294901760
    %v1325 = vsub.f32 %v41, %v1324
    %v1326 = vand.u32 %v1325, 4294901760
    %1327 = vmatpush1.msra.mxu0 %v1326
    %1328 = vmatprep.subr.mxu0 0.0
    %v1329 = vand.u32 %v42, 4294901760
    %v1330 = vsub.f32 %v42, %v1329
    %v1331 = vand.u32 %v1330, 4294901760
    %1332 = vmatpush1.msra.mxu0 %v1331
    %1333 = vmatprep.subr.mxu0 0.0
    %v1334 = vand.u32 %v43, 4294901760
    %v1335 = vsub.f32 %v43, %v1334
    %v1336 = vand.u32 %v1335, 4294901760
    %1337 = vmatpush1.msra.mxu0 %v1336
    %1338 = vmatprep.subr.mxu0 0.0
    %v1339 = vand.u32 %v44, 4294901760
    %v1340 = vsub.f32 %v44, %v1339
    %v1341 = vand.u32 %v1340, 4294901760
    %1342 = vmatpush1.msra.mxu0 %v1341
    %1343 = vmatprep.subr.mxu0 0.0
    %v1344 = vand.u32 %v45, 4294901760
    %v1345 = vsub.f32 %v45, %v1344
    %v1346 = vand.u32 %v1345, 4294901760
    %1347 = vmatpush1.msra.mxu0 %v1346
    %1348 = vmatprep.subr.mxu0 0.0
    %v1349 = vand.u32 %v46, 4294901760
    %v1350 = vsub.f32 %v46, %v1349
    %v1351 = vand.u32 %v1350, 4294901760
    %1352 = vmatpush1.msra.mxu0 %v1351
    %1353 = vmatprep.subr.mxu0 0.0
    %v1354 = vand.u32 %v47, 4294901760
    %v1355 = vsub.f32 %v47, %v1354
    %v1356 = vand.u32 %v1355, 4294901760
    %1357 = vmatpush1.msra.mxu0 %v1356
    %1358 = vmatprep.subr.mxu0 0.0
    %v1359 = vand.u32 %v48, 4294901760
    %v1360 = vsub.f32 %v48, %v1359
    %v1361 = vand.u32 %v1360, 4294901760
    %1362 = vmatpush1.msra.mxu0 %v1361
    %1363 = vmatprep.subr.mxu0 0.0
    %v1364 = vand.u32 %v49, 4294901760
    %v1365 = vsub.f32 %v49, %v1364
    %v1366 = vand.u32 %v1365, 4294901760
    %1367 = vmatpush1.msra.mxu0 %v1366
    %1368 = vmatprep.subr.mxu0 0.0
    %v1369 = vand.u32 %v50, 4294901760
    %v1370 = vsub.f32 %v50, %v1369
    %v1371 = vand.u32 %v1370, 4294901760
    %1372 = vmatpush1.msra.mxu0 %v1371
    %1373 = vmatprep.subr.mxu0 0.0
    %v1374 = vand.u32 %v51, 4294901760
    %v1375 = vsub.f32 %v51, %v1374
    %v1376 = vand.u32 %v1375, 4294901760
    %1377 = vmatpush1.msra.mxu0 %v1376
    %1378 = vmatprep.subr.mxu0 0.0
    %v1379 = vand.u32 %v52, 4294901760
    %v1380 = vsub.f32 %v52, %v1379
    %v1381 = vand.u32 %v1380, 4294901760
    %1382 = vmatpush1.msra.mxu0 %v1381
    %1383 = vmatprep.subr.mxu0 0.0
    %v1384 = vand.u32 %v53, 4294901760
    %v1385 = vsub.f32 %v53, %v1384
    %v1386 = vand.u32 %v1385, 4294901760
    %1387 = vmatpush1.msra.mxu0 %v1386
    %1388 = vmatprep.subr.mxu0 0.0
    %v1389 = vand.u32 %v54, 4294901760
    %v1390 = vsub.f32 %v54, %v1389
    %v1391 = vand.u32 %v1390, 4294901760
    %1392 = vmatpush1.msra.mxu0 %v1391
    %1393 = vmatprep.subr.mxu0 0.0
    %v1394 = vand.u32 %v55, 4294901760
    %v1395 = vsub.f32 %v55, %v1394
    %v1396 = vand.u32 %v1395, 4294901760
    %1397 = vmatpush1.msra.mxu0 %v1396
    %1398 = vmatprep.subr.mxu0 0.0
    %v1399 = vand.u32 %v56, 4294901760
    %v1400 = vsub.f32 %v56, %v1399
    %v1401 = vand.u32 %v1400, 4294901760
    %1402 = vmatpush1.msra.mxu0 %v1401
    %1403 = vmatprep.subr.mxu0 0.0
    %v1404 = vand.u32 %v57, 4294901760
    %v1405 = vsub.f32 %v57, %v1404
    %v1406 = vand.u32 %v1405, 4294901760
    %1407 = vmatpush1.msra.mxu0 %v1406
    %1408 = vmatprep.subr.mxu0 0.0
    %v1409 = vand.u32 %v58, 4294901760
    %v1410 = vsub.f32 %v58, %v1409
    %v1411 = vand.u32 %v1410, 4294901760
    %1412 = vmatpush1.msra.mxu0 %v1411
    %1413 = vmatprep.subr.mxu0 0.0
    %v1414 = vand.u32 %v59, 4294901760
    %v1415 = vsub.f32 %v59, %v1414
    %v1416 = vand.u32 %v1415, 4294901760
    %1417 = vmatpush1.msra.mxu0 %v1416
    %1418 = vmatprep.subr.mxu0 0.0
    %1419 = vmatpush1.msra.mxu0 0.0
    %1420 = vmatprep.subr.mxu0 0.0
    %1421 = vmatpush1.msra.mxu0 0.0
    %1422 = vmatprep.subr.mxu0 0.0
    %1423 = vmatpush1.msra.mxu0 0.0
    %1424 = vmatprep.subr.mxu0 0.0
    %1425 = vmatpush1.msra.mxu0 0.0
    %1426 = vmatprep.subr.mxu0 0.0
    %1427 = vmatpush1.msra.mxu0 0.0
    %1428 = vmatprep.subr.mxu0 0.0
    %1429 = vmatpush1.msra.mxu0 0.0
    %1430 = vmatprep.subr.mxu0 0.0
    %1431 = vmatpush1.msra.mxu0 0.0
    %1432 = vmatprep.subr.mxu0 0.0
    %1433 = vmatpush1.msra.mxu0 0.0
    %1434 = vmatprep.subr.mxu0 0.0
    %1435 = vmatpush1.msra.mxu0 0.0
    %1436 = vmatprep.subr.mxu0 0.0
    %1437 = vmatpush1.msra.mxu0 0.0
    %1438 = vmatprep.subr.mxu0 0.0
    %1439 = vmatpush1.msra.mxu0 0.0
    %1440 = vmatprep.subr.mxu0 0.0
    %1441 = vmatpush1.msra.mxu0 0.0
    %v1442 = vand.u32 %v128, 4294901760
    %1443 = vmatprep.mubr.f32.mxu0 %v1442
    %v1444 = vand.u32 %v124, 4294901760
    %1445 = vmatmul.mubr.f32.gmra.mrb[0].mxu0 %v1444
    %v1446 = vpop.f32.mrb[0].mxu0
    %v1447 = vadd.f32 %v1315, %v1446
    %v1448 = vpop.f32.mrb[0].mxu0
    %1449 = vdwg.mxu0
    %1450 = vmatprep.subr.mxu0 0.0
    %v1451 = vand.u32 %v40, 4294901760
    %1452 = vmatpush1.msra.mxu0 %v1451
    %1453 = vmatprep.subr.mxu0 0.0
    %v1454 = vand.u32 %v41, 4294901760
    %1455 = vmatpush1.msra.mxu0 %v1454
    %1456 = vmatprep.subr.mxu0 0.0
    %v1457 = vand.u32 %v42, 4294901760
    %1458 = vmatpush1.msra.mxu0 %v1457
    %1459 = vmatprep.subr.mxu0 0.0
    %v1460 = vand.u32 %v43, 4294901760
    %1461 = vmatpush1.msra.mxu0 %v1460
    %1462 = vmatprep.subr.mxu0 0.0
    %v1463 = vand.u32 %v44, 4294901760
    %1464 = vmatpush1.msra.mxu0 %v1463
    %1465 = vmatprep.subr.mxu0 0.0
    %v1466 = vand.u32 %v45, 4294901760
    %1467 = vmatpush1.msra.mxu0 %v1466
    %1468 = vmatprep.subr.mxu0 0.0
    %v1469 = vand.u32 %v46, 4294901760
    %1470 = vmatpush1.msra.mxu0 %v1469
    %1471 = vmatprep.subr.mxu0 0.0
    %v1472 = vand.u32 %v47, 4294901760
    %1473 = vmatpush1.msra.mxu0 %v1472
    %1474 = vmatprep.subr.mxu0 0.0
    %v1475 = vand.u32 %v48, 4294901760
    %1476 = vmatpush1.msra.mxu0 %v1475
    %1477 = vmatprep.subr.mxu0 0.0
    %v1478 = vand.u32 %v49, 4294901760
    %1479 = vmatpush1.msra.mxu0 %v1478
    %1480 = vmatprep.subr.mxu0 0.0
    %v1481 = vand.u32 %v50, 4294901760
    %1482 = vmatpush1.msra.mxu0 %v1481
    %1483 = vmatprep.subr.mxu0 0.0
    %v1484 = vand.u32 %v51, 4294901760
    %1485 = vmatpush1.msra.mxu0 %v1484
    %1486 = vmatprep.subr.mxu0 0.0
    %v1487 = vand.u32 %v52, 4294901760
    %1488 = vmatpush1.msra.mxu0 %v1487
    %1489 = vmatprep.subr.mxu0 0.0
    %v1490 = vand.u32 %v53, 4294901760
    %1491 = vmatpush1.msra.mxu0 %v1490
    %1492 = vmatprep.subr.mxu0 0.0
    %v1493 = vand.u32 %v54, 4294901760
    %1494 = vmatpush1.msra.mxu0 %v1493
    %1495 = vmatprep.subr.mxu0 0.0
    %v1496 = vand.u32 %v55, 4294901760
    %1497 = vmatpush1.msra.mxu0 %v1496
    %1498 = vmatprep.subr.mxu0 0.0
    %v1499 = vand.u32 %v56, 4294901760
    %1500 = vmatpush1.msra.mxu0 %v1499
    %1501 = vmatprep.subr.mxu0 0.0
    %v1502 = vand.u32 %v57, 4294901760
    %1503 = vmatpush1.msra.mxu0 %v1502
    %1504 = vmatprep.subr.mxu0 0.0
    %v1505 = vand.u32 %v58, 4294901760
    %1506 = vmatpush1.msra.mxu0 %v1505
    %1507 = vmatprep.subr.mxu0 0.0
    %v1508 = vand.u32 %v59, 4294901760
    %1509 = vmatpush1.msra.mxu0 %v1508
    %1510 = vmatprep.subr.mxu0 0.0
    %1511 = vmatpush1.msra.mxu0 0.0
    %1512 = vmatprep.subr.mxu0 0.0
    %1513 = vmatpush1.msra.mxu0 0.0
    %1514 = vmatprep.subr.mxu0 0.0
    %1515 = vmatpush1.msra.mxu0 0.0
    %1516 = vmatprep.subr.mxu0 0.0
    %1517 = vmatpush1.msra.mxu0 0.0
    %1518 = vmatprep.subr.mxu0 0.0
    %1519 = vmatpush1.msra.mxu0 0.0
    %1520 = vmatprep.subr.mxu0 0.0
    %1521 = vmatpush1.msra.mxu0 0.0
    %1522 = vmatprep.subr.mxu0 0.0
    %1523 = vmatpush1.msra.mxu0 0.0
    %1524 = vmatprep.subr.mxu0 0.0
    %1525 = vmatpush1.msra.mxu0 0.0
    %1526 = vmatprep.subr.mxu0 0.0
    %1527 = vmatpush1.msra.mxu0 0.0
    %1528 = vmatprep.subr.mxu0 0.0
    %1529 = vmatpush1.msra.mxu0 0.0
    %1530 = vmatprep.subr.mxu0 0.0
    %1531 = vmatpush1.msra.mxu0 0.0
    %1532 = vmatprep.subr.mxu0 0.0
    %1533 = vmatpush1.msra.mxu0 0.0
    %v1534 = vand.u32 %v128, 4294901760
    %1535 = vmatprep.mubr.f32.mxu0 %v1534
    %v1536 = vand.u32 %v124, 4294901760
    %1537 = vmatmul.mubr.f32.gmra.mrb[0].mxu0 %v1536
    %v1538 = vpop.f32.mrb[0].mxu0
    %v1539 = vadd.f32 %v1447, %v1538
    %v1540 = vpop.f32.mrb[0].mxu0
    %1541 = vdwg.mxu0
    %v1542 = vmul.f32 %v833, %v833
    %v1543 = vmul.f32 %v1539, %v1539
    %v1544 = vadd.f32 %v1542, %v1543
    %vm1545 = vcmask 99328
    %v1546 = vsel %vm1545, %v1544, 0.0
    %1547 = vadd.xlane.f32.xlu0 %v1546
    %v1548 = vpop.xlane.xlu0 %1547
    %v1549 = vrcp.pop %v1548
    %v1550 = vmul.f32 %v1544, %v1549
    %v1553 = vunpack.c.l.s4 1983009808
    %v1554 = vunpack.c.0.s8 %v1553
    %v1555 = vlaneseq
    %v1556 = vshrl.u32 %v1555, 7
    %v1557 = vsub.s32 %v1554, %v1556
    %v1558 = vrot.slane %v116, %v1557
    %v1559 = vcombine.high %v1558, %v1558
    %v1561 = vsel %vm127, %v1559, 0
    %1563 = vmatprep.subr.mxu0 0.0
    %v1564 = vand.u32 %v20, 4294901760
    %1565 = vmatpush1.msra.mxu0 %v1564
    %1566 = vmatprep.subr.mxu0 0.0
    %v1567 = vand.u32 %v21, 4294901760
    %1568 = vmatpush1.msra.mxu0 %v1567
    %1569 = vmatprep.subr.mxu0 0.0
    %v1570 = vand.u32 %v22, 4294901760
    %1571 = vmatpush1.msra.mxu0 %v1570
    %1572 = vmatprep.subr.mxu0 0.0
    %v1573 = vand.u32 %v23, 4294901760
    %1574 = vmatpush1.msra.mxu0 %v1573
    %1575 = vmatprep.subr.mxu0 0.0
    %v1576 = vand.u32 %v24, 4294901760
    %1577 = vmatpush1.msra.mxu0 %v1576
    %1578 = vmatprep.subr.mxu0 0.0
    %v1579 = vand.u32 %v25, 4294901760
    %1580 = vmatpush1.msra.mxu0 %v1579
    %1581 = vmatprep.subr.mxu0 0.0
    %v1582 = vand.u32 %v26, 4294901760
    %1583 = vmatpush1.msra.mxu0 %v1582
    %1584 = vmatprep.subr.mxu0 0.0
    %v1585 = vand.u32 %v27, 4294901760
    %1586 = vmatpush1.msra.mxu0 %v1585
    %1587 = vmatprep.subr.mxu0 0.0
    %v1588 = vand.u32 %v28, 4294901760
    %1589 = vmatpush1.msra.mxu0 %v1588
    %1590 = vmatprep.subr.mxu0 0.0
    %v1591 = vand.u32 %v29, 4294901760
    %1592 = vmatpush1.msra.mxu0 %v1591
    %1593 = vmatprep.subr.mxu0 0.0
    %v1594 = vand.u32 %v30, 4294901760
    %1595 = vmatpush1.msra.mxu0 %v1594
    %1596 = vmatprep.subr.mxu0 0.0
    %v1597 = vand.u32 %v31, 4294901760
    %1598 = vmatpush1.msra.mxu0 %v1597
    %1599 = vmatprep.subr.mxu0 0.0
    %v1600 = vand.u32 %v32, 4294901760
    %1601 = vmatpush1.msra.mxu0 %v1600
    %1602 = vmatprep.subr.mxu0 0.0
    %v1603 = vand.u32 %v33, 4294901760
    %1604 = vmatpush1.msra.mxu0 %v1603
    %1605 = vmatprep.subr.mxu0 0.0
    %v1606 = vand.u32 %v34, 4294901760
    %1607 = vmatpush1.msra.mxu0 %v1606
    %1608 = vmatprep.subr.mxu0 0.0
    %v1609 = vand.u32 %v35, 4294901760
    %1610 = vmatpush1.msra.mxu0 %v1609
    %1611 = vmatprep.subr.mxu0 0.0
    %v1612 = vand.u32 %v36, 4294901760
    %1613 = vmatpush1.msra.mxu0 %v1612
    %1614 = vmatprep.subr.mxu0 0.0
    %v1615 = vand.u32 %v37, 4294901760
    %1616 = vmatpush1.msra.mxu0 %v1615
    %1617 = vmatprep.subr.mxu0 0.0
    %v1618 = vand.u32 %v38, 4294901760
    %1619 = vmatpush1.msra.mxu0 %v1618
    %1620 = vmatprep.subr.mxu0 0.0
    %v1621 = vand.u32 %v39, 4294901760
    %1622 = vmatpush1.msra.mxu0 %v1621
    %1623 = vmatprep.subr.mxu0 0.0
    %1624 = vmatpush1.msra.mxu0 0.0
    %1625 = vmatprep.subr.mxu0 0.0
    %1626 = vmatpush1.msra.mxu0 0.0
    %1627 = vmatprep.subr.mxu0 0.0
    %1628 = vmatpush1.msra.mxu0 0.0
    %1629 = vmatprep.subr.mxu0 0.0
    %1630 = vmatpush1.msra.mxu0 0.0
    %1631 = vmatprep.subr.mxu0 0.0
    %1632 = vmatpush1.msra.mxu0 0.0
    %1633 = vmatprep.subr.mxu0 0.0
    %1634 = vmatpush1.msra.mxu0 0.0
    %1635 = vmatprep.subr.mxu0 0.0
    %1636 = vmatpush1.msra.mxu0 0.0
    %1637 = vmatprep.subr.mxu0 0.0
    %1638 = vmatpush1.msra.mxu0 0.0
    %1639 = vmatprep.subr.mxu0 0.0
    %1640 = vmatpush1.msra.mxu0 0.0
    %1641 = vmatprep.subr.mxu0 0.0
    %1642 = vmatpush1.msra.mxu0 0.0
    %1643 = vmatprep.subr.mxu0 0.0
    %1644 = vmatpush1.msra.mxu0 0.0
    %1645 = vmatprep.subr.mxu0 0.0
    %1646 = vmatpush1.msra.mxu0 0.0
    %v1647 = vand.u32 %v1561, 4294901760
    %v1648 = vsub.f32 %v1561, %v1647
    %v1649 = vand.u32 %v1648, 4294901760
    %v1650 = vsub.f32 %v1648, %v1649
    %v1651 = vand.u32 %v1650, 4294901760
    %1652 = vmatprep.mubr.f32.mxu0 %v1651
    %v1653 = vand.u32 %v1558, 4294901760
    %v1654 = vsub.f32 %v1558, %v1653
    %v1655 = vand.u32 %v1654, 4294901760
    %v1656 = vsub.f32 %v1654, %v1655
    %v1657 = vand.u32 %v1656, 4294901760
    %1658 = vmatmul.mubr.f32.gmra.mrb[0].mxu0 %v1657
    %v1659 = vpop.f32.mrb[0].mxu0
    %v1660 = vadd.f32 0.0, %v1659
    %v1661 = vpop.f32.mrb[0].mxu0
    %1662 = vdwg.mxu0
    %1663 = vmatprep.subr.mxu0 0.0
    %v1664 = vand.u32 %v20, 4294901760
    %v1665 = vsub.f32 %v20, %v1664
    %v1666 = vand.u32 %v1665, 4294901760
    %v1667 = vsub.f32 %v1665, %v1666
    %v1668 = vand.u32 %v1667, 4294901760
    %1669 = vmatpush1.msra.mxu0 %v1668
    %1670 = vmatprep.subr.mxu0 0.0
    %v1671 = vand.u32 %v21, 4294901760
    %v1672 = vsub.f32 %v21, %v1671
    %v1673 = vand.u32 %v1672, 4294901760
    %v1674 = vsub.f32 %v1672, %v1673
    %v1675 = vand.u32 %v1674, 4294901760
    %1676 = vmatpush1.msra.mxu0 %v1675
    %1677 = vmatprep.subr.mxu0 0.0
    %v1678 = vand.u32 %v22, 4294901760
    %v1679 = vsub.f32 %v22, %v1678
    %v1680 = vand.u32 %v1679, 4294901760
    %v1681 = vsub.f32 %v1679, %v1680
    %v1682 = vand.u32 %v1681, 4294901760
    %1683 = vmatpush1.msra.mxu0 %v1682
    %1684 = vmatprep.subr.mxu0 0.0
    %v1685 = vand.u32 %v23, 4294901760
    %v1686 = vsub.f32 %v23, %v1685
    %v1687 = vand.u32 %v1686, 4294901760
    %v1688 = vsub.f32 %v1686, %v1687
    %v1689 = vand.u32 %v1688, 4294901760
    %1690 = vmatpush1.msra.mxu0 %v1689
    %1691 = vmatprep.subr.mxu0 0.0
    %v1692 = vand.u32 %v24, 4294901760
    %v1693 = vsub.f32 %v24, %v1692
    %v1694 = vand.u32 %v1693, 4294901760
    %v1695 = vsub.f32 %v1693, %v1694
    %v1696 = vand.u32 %v1695, 4294901760
    %1697 = vmatpush1.msra.mxu0 %v1696
    %1698 = vmatprep.subr.mxu0 0.0
    %v1699 = vand.u32 %v25, 4294901760
    %v1700 = vsub.f32 %v25, %v1699
    %v1701 = vand.u32 %v1700, 4294901760
    %v1702 = vsub.f32 %v1700, %v1701
    %v1703 = vand.u32 %v1702, 4294901760
    %1704 = vmatpush1.msra.mxu0 %v1703
    %1705 = vmatprep.subr.mxu0 0.0
    %v1706 = vand.u32 %v26, 4294901760
    %v1707 = vsub.f32 %v26, %v1706
    %v1708 = vand.u32 %v1707, 4294901760
    %v1709 = vsub.f32 %v1707, %v1708
    %v1710 = vand.u32 %v1709, 4294901760
    %1711 = vmatpush1.msra.mxu0 %v1710
    %1712 = vmatprep.subr.mxu0 0.0
    %v1713 = vand.u32 %v27, 4294901760
    %v1714 = vsub.f32 %v27, %v1713
    %v1715 = vand.u32 %v1714, 4294901760
    %v1716 = vsub.f32 %v1714, %v1715
    %v1717 = vand.u32 %v1716, 4294901760
    %1718 = vmatpush1.msra.mxu0 %v1717
    %1719 = vmatprep.subr.mxu0 0.0
    %v1720 = vand.u32 %v28, 4294901760
    %v1721 = vsub.f32 %v28, %v1720
    %v1722 = vand.u32 %v1721, 4294901760
    %v1723 = vsub.f32 %v1721, %v1722
    %v1724 = vand.u32 %v1723, 4294901760
    %1725 = vmatpush1.msra.mxu0 %v1724
    %1726 = vmatprep.subr.mxu0 0.0
    %v1727 = vand.u32 %v29, 4294901760
    %v1728 = vsub.f32 %v29, %v1727
    %v1729 = vand.u32 %v1728, 4294901760
    %v1730 = vsub.f32 %v1728, %v1729
    %v1731 = vand.u32 %v1730, 4294901760
    %1732 = vmatpush1.msra.mxu0 %v1731
    %1733 = vmatprep.subr.mxu0 0.0
    %v1734 = vand.u32 %v30, 4294901760
    %v1735 = vsub.f32 %v30, %v1734
    %v1736 = vand.u32 %v1735, 4294901760
    %v1737 = vsub.f32 %v1735, %v1736
    %v1738 = vand.u32 %v1737, 4294901760
    %1739 = vmatpush1.msra.mxu0 %v1738
    %1740 = vmatprep.subr.mxu0 0.0
    %v1741 = vand.u32 %v31, 4294901760
    %v1742 = vsub.f32 %v31, %v1741
    %v1743 = vand.u32 %v1742, 4294901760
    %v1744 = vsub.f32 %v1742, %v1743
    %v1745 = vand.u32 %v1744, 4294901760
    %1746 = vmatpush1.msra.mxu0 %v1745
    %1747 = vmatprep.subr.mxu0 0.0
    %v1748 = vand.u32 %v32, 4294901760
    %v1749 = vsub.f32 %v32, %v1748
    %v1750 = vand.u32 %v1749, 4294901760
    %v1751 = vsub.f32 %v1749, %v1750
    %v1752 = vand.u32 %v1751, 4294901760
    %1753 = vmatpush1.msra.mxu0 %v1752
    %1754 = vmatprep.subr.mxu0 0.0
    %v1755 = vand.u32 %v33, 4294901760
    %v1756 = vsub.f32 %v33, %v1755
    %v1757 = vand.u32 %v1756, 4294901760
    %v1758 = vsub.f32 %v1756, %v1757
    %v1759 = vand.u32 %v1758, 4294901760
    %1760 = vmatpush1.msra.mxu0 %v1759
    %1761 = vmatprep.subr.mxu0 0.0
    %v1762 = vand.u32 %v34, 4294901760
    %v1763 = vsub.f32 %v34, %v1762
    %v1764 = vand.u32 %v1763, 4294901760
    %v1765 = vsub.f32 %v1763, %v1764
    %v1766 = vand.u32 %v1765, 4294901760
    %1767 = vmatpush1.msra.mxu0 %v1766
    %1768 = vmatprep.subr.mxu0 0.0
    %v1769 = vand.u32 %v35, 4294901760
    %v1770 = vsub.f32 %v35, %v1769
    %v1771 = vand.u32 %v1770, 4294901760
    %v1772 = vsub.f32 %v1770, %v1771
    %v1773 = vand.u32 %v1772, 4294901760
    %1774 = vmatpush1.msra.mxu0 %v1773
    %1775 = vmatprep.subr.mxu0 0.0
    %v1776 = vand.u32 %v36, 4294901760
    %v1777 = vsub.f32 %v36, %v1776
    %v1778 = vand.u32 %v1777, 4294901760
    %v1779 = vsub.f32 %v1777, %v1778
    %v1780 = vand.u32 %v1779, 4294901760
    %1781 = vmatpush1.msra.mxu0 %v1780
    %1782 = vmatprep.subr.mxu0 0.0
    %v1783 = vand.u32 %v37, 4294901760
    %v1784 = vsub.f32 %v37, %v1783
    %v1785 = vand.u32 %v1784, 4294901760
    %v1786 = vsub.f32 %v1784, %v1785
    %v1787 = vand.u32 %v1786, 4294901760
    %1788 = vmatpush1.msra.mxu0 %v1787
    %1789 = vmatprep.subr.mxu0 0.0
    %v1790 = vand.u32 %v38, 4294901760
    %v1791 = vsub.f32 %v38, %v1790
    %v1792 = vand.u32 %v1791, 4294901760
    %v1793 = vsub.f32 %v1791, %v1792
    %v1794 = vand.u32 %v1793, 4294901760
    %1795 = vmatpush1.msra.mxu0 %v1794
    %1796 = vmatprep.subr.mxu0 0.0
    %v1797 = vand.u32 %v39, 4294901760
    %v1798 = vsub.f32 %v39, %v1797
    %v1799 = vand.u32 %v1798, 4294901760
    %v1800 = vsub.f32 %v1798, %v1799
    %v1801 = vand.u32 %v1800, 4294901760
    %1802 = vmatpush1.msra.mxu0 %v1801
    %1803 = vmatprep.subr.mxu0 0.0
    %1804 = vmatpush1.msra.mxu0 0.0
    %1805 = vmatprep.subr.mxu0 0.0
    %1806 = vmatpush1.msra.mxu0 0.0
    %1807 = vmatprep.subr.mxu0 0.0
    %1808 = vmatpush1.msra.mxu0 0.0
    %1809 = vmatprep.subr.mxu0 0.0
    %1810 = vmatpush1.msra.mxu0 0.0
    %1811 = vmatprep.subr.mxu0 0.0
    %1812 = vmatpush1.msra.mxu0 0.0
    %1813 = vmatprep.subr.mxu0 0.0
    %1814 = vmatpush1.msra.mxu0 0.0
    %1815 = vmatprep.subr.mxu0 0.0
    %1816 = vmatpush1.msra.mxu0 0.0
    %1817 = vmatprep.subr.mxu0 0.0
    %1818 = vmatpush1.msra.mxu0 0.0
    %1819 = vmatprep.subr.mxu0 0.0
    %1820 = vmatpush1.msra.mxu0 0.0
    %1821 = vmatprep.subr.mxu0 0.0
    %1822 = vmatpush1.msra.mxu0 0.0
    %1823 = vmatprep.subr.mxu0 0.0
    %1824 = vmatpush1.msra.mxu0 0.0
    %1825 = vmatprep.subr.mxu0 0.0
    %1826 = vmatpush1.msra.mxu0 0.0
    %v1827 = vand.u32 %v1561, 4294901760
    %1828 = vmatprep.mubr.f32.mxu0 %v1827
    %v1829 = vand.u32 %v1558, 4294901760
    %1830 = vmatmul.mubr.f32.gmra.mrb[0].mxu0 %v1829
    %v1831 = vpop.f32.mrb[0].mxu0
    %v1832 = vadd.f32 %v1660, %v1831
    %v1833 = vpop.f32.mrb[0].mxu0
    %1834 = vdwg.mxu0
    %1835 = vmatprep.subr.mxu0 0.0
    %v1836 = vand.u32 %v20, 4294901760
    %v1837 = vsub.f32 %v20, %v1836
    %1838 = vmatpush1.msra.mxu0 %v1837
    %1839 = vmatprep.subr.mxu0 0.0
    %v1840 = vand.u32 %v21, 4294901760
    %v1841 = vsub.f32 %v21, %v1840
    %1842 = vmatpush1.msra.mxu0 %v1841
    %1843 = vmatprep.subr.mxu0 0.0
    %v1844 = vand.u32 %v22, 4294901760
    %v1845 = vsub.f32 %v22, %v1844
    %1846 = vmatpush1.msra.mxu0 %v1845
    %1847 = vmatprep.subr.mxu0 0.0
    %v1848 = vand.u32 %v23, 4294901760
    %v1849 = vsub.f32 %v23, %v1848
    %1850 = vmatpush1.msra.mxu0 %v1849
    %1851 = vmatprep.subr.mxu0 0.0
    %v1852 = vand.u32 %v24, 4294901760
    %v1853 = vsub.f32 %v24, %v1852
    %1854 = vmatpush1.msra.mxu0 %v1853
    %1855 = vmatprep.subr.mxu0 0.0
    %v1856 = vand.u32 %v25, 4294901760
    %v1857 = vsub.f32 %v25, %v1856
    %1858 = vmatpush1.msra.mxu0 %v1857
    %1859 = vmatprep.subr.mxu0 0.0
    %v1860 = vand.u32 %v26, 4294901760
    %v1861 = vsub.f32 %v26, %v1860
    %1862 = vmatpush1.msra.mxu0 %v1861
    %1863 = vmatprep.subr.mxu0 0.0
    %v1864 = vand.u32 %v27, 4294901760
    %v1865 = vsub.f32 %v27, %v1864
    %1866 = vmatpush1.msra.mxu0 %v1865
    %1867 = vmatprep.subr.mxu0 0.0
    %v1868 = vand.u32 %v28, 4294901760
    %v1869 = vsub.f32 %v28, %v1868
    %1870 = vmatpush1.msra.mxu0 %v1869
    %1871 = vmatprep.subr.mxu0 0.0
    %v1872 = vand.u32 %v29, 4294901760
    %v1873 = vsub.f32 %v29, %v1872
    %1874 = vmatpush1.msra.mxu0 %v1873
    %1875 = vmatprep.subr.mxu0 0.0
    %v1876 = vand.u32 %v30, 4294901760
    %v1877 = vsub.f32 %v30, %v1876
    %1878 = vmatpush1.msra.mxu0 %v1877
    %1879 = vmatprep.subr.mxu0 0.0
    %v1880 = vand.u32 %v31, 4294901760
    %v1881 = vsub.f32 %v31, %v1880
    %1882 = vmatpush1.msra.mxu0 %v1881
    %1883 = vmatprep.subr.mxu0 0.0
    %v1884 = vand.u32 %v32, 4294901760
    %v1885 = vsub.f32 %v32, %v1884
    %1886 = vmatpush1.msra.mxu0 %v1885
    %1887 = vmatprep.subr.mxu0 0.0
    %v1888 = vand.u32 %v33, 4294901760
    %v1889 = vsub.f32 %v33, %v1888
    %1890 = vmatpush1.msra.mxu0 %v1889
    %1891 = vmatprep.subr.mxu0 0.0
    %v1892 = vand.u32 %v34, 4294901760
    %v1893 = vsub.f32 %v34, %v1892
    %1894 = vmatpush1.msra.mxu0 %v1893
    %1895 = vmatprep.subr.mxu0 0.0
    %v1896 = vand.u32 %v35, 4294901760
    %v1897 = vsub.f32 %v35, %v1896
    %1898 = vmatpush1.msra.mxu0 %v1897
    %1899 = vmatprep.subr.mxu0 0.0
    %v1900 = vand.u32 %v36, 4294901760
    %v1901 = vsub.f32 %v36, %v1900
    %1902 = vmatpush1.msra.mxu0 %v1901
    %1903 = vmatprep.subr.mxu0 0.0
    %v1904 = vand.u32 %v37, 4294901760
    %v1905 = vsub.f32 %v37, %v1904
    %1906 = vmatpush1.msra.mxu0 %v1905
    %1907 = vmatprep.subr.mxu0 0.0
    %v1908 = vand.u32 %v38, 4294901760
    %v1909 = vsub.f32 %v38, %v1908
    %1910 = vmatpush1.msra.mxu0 %v1909
    %1911 = vmatprep.subr.mxu0 0.0
    %v1912 = vand.u32 %v39, 4294901760
    %v1913 = vsub.f32 %v39, %v1912
    %1914 = vmatpush1.msra.mxu0 %v1913
    %1915 = vmatprep.subr.mxu0 0.0
    %1916 = vmatpush1.msra.mxu0 0.0
    %1917 = vmatprep.subr.mxu0 0.0
    %1918 = vmatpush1.msra.mxu0 0.0
    %1919 = vmatprep.subr.mxu0 0.0
    %1920 = vmatpush1.msra.mxu0 0.0
    %1921 = vmatprep.subr.mxu0 0.0
    %1922 = vmatpush1.msra.mxu0 0.0
    %1923 = vmatprep.subr.mxu0 0.0
    %1924 = vmatpush1.msra.mxu0 0.0
    %1925 = vmatprep.subr.mxu0 0.0
    %1926 = vmatpush1.msra.mxu0 0.0
    %1927 = vmatprep.subr.mxu0 0.0
    %1928 = vmatpush1.msra.mxu0 0.0
    %1929 = vmatprep.subr.mxu0 0.0
    %1930 = vmatpush1.msra.mxu0 0.0
    %1931 = vmatprep.subr.mxu0 0.0
    %1932 = vmatpush1.msra.mxu0 0.0
    %1933 = vmatprep.subr.mxu0 0.0
    %1934 = vmatpush1.msra.mxu0 0.0
    %1935 = vmatprep.subr.mxu0 0.0
    %1936 = vmatpush1.msra.mxu0 0.0
    %1937 = vmatprep.subr.mxu0 0.0
    %1938 = vmatpush1.msra.mxu0 0.0
    %v1939 = vand.u32 %v1561, 4294901760
    %v1940 = vsub.f32 %v1561, %v1939
    %1941 = vmatprep.mubr.f32.mxu0 %v1940
    %v1942 = vand.u32 %v1558, 4294901760
    %v1943 = vsub.f32 %v1558, %v1942
    %1944 = vmatmul.mubr.f32.gmra.mrb[0].mxu0 %v1943
    %v1945 = vpop.f32.mrb[0].mxu0
    %v1946 = vadd.f32 %v1832, %v1945
    %v1947 = vpop.f32.mrb[0].mxu0
    %1948 = vdwg.mxu0
    %1949 = vmatprep.subr.mxu0 0.0
    %v1950 = vand.u32 %v20, 4294901760
    %1951 = vmatpush1.msra.mxu0 %v1950
    %1952 = vmatprep.subr.mxu0 0.0
    %v1953 = vand.u32 %v21, 4294901760
    %1954 = vmatpush1.msra.mxu0 %v1953
    %1955 = vmatprep.subr.mxu0 0.0
    %v1956 = vand.u32 %v22, 4294901760
    %1957 = vmatpush1.msra.mxu0 %v1956
    %1958 = vmatprep.subr.mxu0 0.0
    %v1959 = vand.u32 %v23, 4294901760
    %1960 = vmatpush1.msra.mxu0 %v1959
    %1961 = vmatprep.subr.mxu0 0.0
    %v1962 = vand.u32 %v24, 4294901760
    %1963 = vmatpush1.msra.mxu0 %v1962
    %1964 = vmatprep.subr.mxu0 0.0
    %v1965 = vand.u32 %v25, 4294901760
    %1966 = vmatpush1.msra.mxu0 %v1965
    %1967 = vmatprep.subr.mxu0 0.0
    %v1968 = vand.u32 %v26, 4294901760
    %1969 = vmatpush1.msra.mxu0 %v1968
    %1970 = vmatprep.subr.mxu0 0.0
    %v1971 = vand.u32 %v27, 4294901760
    %1972 = vmatpush1.msra.mxu0 %v1971
    %1973 = vmatprep.subr.mxu0 0.0
    %v1974 = vand.u32 %v28, 4294901760
    %1975 = vmatpush1.msra.mxu0 %v1974
    %1976 = vmatprep.subr.mxu0 0.0
    %v1977 = vand.u32 %v29, 4294901760
    %1978 = vmatpush1.msra.mxu0 %v1977
    %1979 = vmatprep.subr.mxu0 0.0
    %v1980 = vand.u32 %v30, 4294901760
    %1981 = vmatpush1.msra.mxu0 %v1980
    %1982 = vmatprep.subr.mxu0 0.0
    %v1983 = vand.u32 %v31, 4294901760
    %1984 = vmatpush1.msra.mxu0 %v1983
    %1985 = vmatprep.subr.mxu0 0.0
    %v1986 = vand.u32 %v32, 4294901760
    %1987 = vmatpush1.msra.mxu0 %v1986
    %1988 = vmatprep.subr.mxu0 0.0
    %v1989 = vand.u32 %v33, 4294901760
    %1990 = vmatpush1.msra.mxu0 %v1989
    %1991 = vmatprep.subr.mxu0 0.0
    %v1992 = vand.u32 %v34, 4294901760
    %1993 = vmatpush1.msra.mxu0 %v1992
    %1994 = vmatprep.subr.mxu0 0.0
    %v1995 = vand.u32 %v35, 4294901760
    %1996 = vmatpush1.msra.mxu0 %v1995
    %1997 = vmatprep.subr.mxu0 0.0
    %v1998 = vand.u32 %v36, 4294901760
    %1999 = vmatpush1.msra.mxu0 %v1998
    %2000 = vmatprep.subr.mxu0 0.0
    %v2001 = vand.u32 %v37, 4294901760
    %2002 = vmatpush1.msra.mxu0 %v2001
    %2003 = vmatprep.subr.mxu0 0.0
    %v2004 = vand.u32 %v38, 4294901760
    %2005 = vmatpush1.msra.mxu0 %v2004
    %2006 = vmatprep.subr.mxu0 0.0
    %v2007 = vand.u32 %v39, 4294901760
    %2008 = vmatpush1.msra.mxu0 %v2007
    %2009 = vmatprep.subr.mxu0 0.0
    %2010 = vmatpush1.msra.mxu0 0.0
    %2011 = vmatprep.subr.mxu0 0.0
    %2012 = vmatpush1.msra.mxu0 0.0
    %2013 = vmatprep.subr.mxu0 0.0
    %2014 = vmatpush1.msra.mxu0 0.0
    %2015 = vmatprep.subr.mxu0 0.0
    %2016 = vmatpush1.msra.mxu0 0.0
    %2017 = vmatprep.subr.mxu0 0.0
    %2018 = vmatpush1.msra.mxu0 0.0
    %2019 = vmatprep.subr.mxu0 0.0
    %2020 = vmatpush1.msra.mxu0 0.0
    %2021 = vmatprep.subr.mxu0 0.0
    %2022 = vmatpush1.msra.mxu0 0.0
    %2023 = vmatprep.subr.mxu0 0.0
    %2024 = vmatpush1.msra.mxu0 0.0
    %2025 = vmatprep.subr.mxu0 0.0
    %2026 = vmatpush1.msra.mxu0 0.0
    %2027 = vmatprep.subr.mxu0 0.0
    %2028 = vmatpush1.msra.mxu0 0.0
    %2029 = vmatprep.subr.mxu0 0.0
    %2030 = vmatpush1.msra.mxu0 0.0
    %2031 = vmatprep.subr.mxu0 0.0
    %2032 = vmatpush1.msra.mxu0 0.0
    %v2033 = vand.u32 %v1561, 4294901760
    %v2034 = vsub.f32 %v1561, %v2033
    %v2035 = vand.u32 %v2034, 4294901760
    %2036 = vmatprep.mubr.f32.mxu0 %v2035
    %v2037 = vand.u32 %v1558, 4294901760
    %v2038 = vsub.f32 %v1558, %v2037
    %v2039 = vand.u32 %v2038, 4294901760
    %2040 = vmatmul.mubr.f32.gmra.mrb[0].mxu0 %v2039
    %v2041 = vpop.f32.mrb[0].mxu0
    %v2042 = vadd.f32 %v1946, %v2041
    %v2043 = vpop.f32.mrb[0].mxu0
    %2044 = vdwg.mxu0
    %2045 = vmatprep.subr.mxu0 0.0
    %v2046 = vand.u32 %v20, 4294901760
    %v2047 = vsub.f32 %v20, %v2046
    %v2048 = vand.u32 %v2047, 4294901760
    %2049 = vmatpush1.msra.mxu0 %v2048
    %2050 = vmatprep.subr.mxu0 0.0
    %v2051 = vand.u32 %v21, 4294901760
    %v2052 = vsub.f32 %v21, %v2051
    %v2053 = vand.u32 %v2052, 4294901760
    %2054 = vmatpush1.msra.mxu0 %v2053
    %2055 = vmatprep.subr.mxu0 0.0
    %v2056 = vand.u32 %v22, 4294901760
    %v2057 = vsub.f32 %v22, %v2056
    %v2058 = vand.u32 %v2057, 4294901760
    %2059 = vmatpush1.msra.mxu0 %v2058
    %2060 = vmatprep.subr.mxu0 0.0
    %v2061 = vand.u32 %v23, 4294901760
    %v2062 = vsub.f32 %v23, %v2061
    %v2063 = vand.u32 %v2062, 4294901760
    %2064 = vmatpush1.msra.mxu0 %v2063
    %2065 = vmatprep.subr.mxu0 0.0
    %v2066 = vand.u32 %v24, 4294901760
    %v2067 = vsub.f32 %v24, %v2066
    %v2068 = vand.u32 %v2067, 4294901760
    %2069 = vmatpush1.msra.mxu0 %v2068
    %2070 = vmatprep.subr.mxu0 0.0
    %v2071 = vand.u32 %v25, 4294901760
    %v2072 = vsub.f32 %v25, %v2071
    %v2073 = vand.u32 %v2072, 4294901760
    %2074 = vmatpush1.msra.mxu0 %v2073
    %2075 = vmatprep.subr.mxu0 0.0
    %v2076 = vand.u32 %v26, 4294901760
    %v2077 = vsub.f32 %v26, %v2076
    %v2078 = vand.u32 %v2077, 4294901760
    %2079 = vmatpush1.msra.mxu0 %v2078
    %2080 = vmatprep.subr.mxu0 0.0
    %v2081 = vand.u32 %v27, 4294901760
    %v2082 = vsub.f32 %v27, %v2081
    %v2083 = vand.u32 %v2082, 4294901760
    %2084 = vmatpush1.msra.mxu0 %v2083
    %2085 = vmatprep.subr.mxu0 0.0
    %v2086 = vand.u32 %v28, 4294901760
    %v2087 = vsub.f32 %v28, %v2086
    %v2088 = vand.u32 %v2087, 4294901760
    %2089 = vmatpush1.msra.mxu0 %v2088
    %2090 = vmatprep.subr.mxu0 0.0
    %v2091 = vand.u32 %v29, 4294901760
    %v2092 = vsub.f32 %v29, %v2091
    %v2093 = vand.u32 %v2092, 4294901760
    %2094 = vmatpush1.msra.mxu0 %v2093
    %2095 = vmatprep.subr.mxu0 0.0
    %v2096 = vand.u32 %v30, 4294901760
    %v2097 = vsub.f32 %v30, %v2096
    %v2098 = vand.u32 %v2097, 4294901760
    %2099 = vmatpush1.msra.mxu0 %v2098
    %2100 = vmatprep.subr.mxu0 0.0
    %v2101 = vand.u32 %v31, 4294901760
    %v2102 = vsub.f32 %v31, %v2101
    %v2103 = vand.u32 %v2102, 4294901760
    %2104 = vmatpush1.msra.mxu0 %v2103
    %2105 = vmatprep.subr.mxu0 0.0
    %v2106 = vand.u32 %v32, 4294901760
    %v2107 = vsub.f32 %v32, %v2106
    %v2108 = vand.u32 %v2107, 4294901760
    %2109 = vmatpush1.msra.mxu0 %v2108
    %2110 = vmatprep.subr.mxu0 0.0
    %v2111 = vand.u32 %v33, 4294901760
    %v2112 = vsub.f32 %v33, %v2111
    %v2113 = vand.u32 %v2112, 4294901760
    %2114 = vmatpush1.msra.mxu0 %v2113
    %2115 = vmatprep.subr.mxu0 0.0
    %v2116 = vand.u32 %v34, 4294901760
    %v2117 = vsub.f32 %v34, %v2116
    %v2118 = vand.u32 %v2117, 4294901760
    %2119 = vmatpush1.msra.mxu0 %v2118
    %2120 = vmatprep.subr.mxu0 0.0
    %v2121 = vand.u32 %v35, 4294901760
    %v2122 = vsub.f32 %v35, %v2121
    %v2123 = vand.u32 %v2122, 4294901760
    %2124 = vmatpush1.msra.mxu0 %v2123
    %2125 = vmatprep.subr.mxu0 0.0
    %v2126 = vand.u32 %v36, 4294901760
    %v2127 = vsub.f32 %v36, %v2126
    %v2128 = vand.u32 %v2127, 4294901760
    %2129 = vmatpush1.msra.mxu0 %v2128
    %2130 = vmatprep.subr.mxu0 0.0
    %v2131 = vand.u32 %v37, 4294901760
    %v2132 = vsub.f32 %v37, %v2131
    %v2133 = vand.u32 %v2132, 4294901760
    %2134 = vmatpush1.msra.mxu0 %v2133
    %2135 = vmatprep.subr.mxu0 0.0
    %v2136 = vand.u32 %v38, 4294901760
    %v2137 = vsub.f32 %v38, %v2136
    %v2138 = vand.u32 %v2137, 4294901760
    %2139 = vmatpush1.msra.mxu0 %v2138
    %2140 = vmatprep.subr.mxu0 0.0
    %v2141 = vand.u32 %v39, 4294901760
    %v2142 = vsub.f32 %v39, %v2141
    %v2143 = vand.u32 %v2142, 4294901760
    %2144 = vmatpush1.msra.mxu0 %v2143
    %2145 = vmatprep.subr.mxu0 0.0
    %2146 = vmatpush1.msra.mxu0 0.0
    %2147 = vmatprep.subr.mxu0 0.0
    %2148 = vmatpush1.msra.mxu0 0.0
    %2149 = vmatprep.subr.mxu0 0.0
    %2150 = vmatpush1.msra.mxu0 0.0
    %2151 = vmatprep.subr.mxu0 0.0
    %2152 = vmatpush1.msra.mxu0 0.0
    %2153 = vmatprep.subr.mxu0 0.0
    %2154 = vmatpush1.msra.mxu0 0.0
    %2155 = vmatprep.subr.mxu0 0.0
    %2156 = vmatpush1.msra.mxu0 0.0
    %2157 = vmatprep.subr.mxu0 0.0
    %2158 = vmatpush1.msra.mxu0 0.0
    %2159 = vmatprep.subr.mxu0 0.0
    %2160 = vmatpush1.msra.mxu0 0.0
    %2161 = vmatprep.subr.mxu0 0.0
    %2162 = vmatpush1.msra.mxu0 0.0
    %2163 = vmatprep.subr.mxu0 0.0
    %2164 = vmatpush1.msra.mxu0 0.0
    %2165 = vmatprep.subr.mxu0 0.0
    %2166 = vmatpush1.msra.mxu0 0.0
    %2167 = vmatprep.subr.mxu0 0.0
    %2168 = vmatpush1.msra.mxu0 0.0
    %v2169 = vand.u32 %v1561, 4294901760
    %2170 = vmatprep.mubr.f32.mxu0 %v2169
    %v2171 = vand.u32 %v1558, 4294901760
    %2172 = vmatmul.mubr.f32.gmra.mrb[0].mxu0 %v2171
    %v2173 = vpop.f32.mrb[0].mxu0
    %v2174 = vadd.f32 %v2042, %v2173
    %v2175 = vpop.f32.mrb[0].mxu0
    %2176 = vdwg.mxu0
    %2177 = vmatprep.subr.mxu0 0.0
    %v2178 = vand.u32 %v20, 4294901760
    %2179 = vmatpush1.msra.mxu0 %v2178
    %2180 = vmatprep.subr.mxu0 0.0
    %v2181 = vand.u32 %v21, 4294901760
    %2182 = vmatpush1.msra.mxu0 %v2181
    %2183 = vmatprep.subr.mxu0 0.0
    %v2184 = vand.u32 %v22, 4294901760
    %2185 = vmatpush1.msra.mxu0 %v2184
    %2186 = vmatprep.subr.mxu0 0.0
    %v2187 = vand.u32 %v23, 4294901760
    %2188 = vmatpush1.msra.mxu0 %v2187
    %2189 = vmatprep.subr.mxu0 0.0
    %v2190 = vand.u32 %v24, 4294901760
    %2191 = vmatpush1.msra.mxu0 %v2190
    %2192 = vmatprep.subr.mxu0 0.0
    %v2193 = vand.u32 %v25, 4294901760
    %2194 = vmatpush1.msra.mxu0 %v2193
    %2195 = vmatprep.subr.mxu0 0.0
    %v2196 = vand.u32 %v26, 4294901760
    %2197 = vmatpush1.msra.mxu0 %v2196
    %2198 = vmatprep.subr.mxu0 0.0
    %v2199 = vand.u32 %v27, 4294901760
    %2200 = vmatpush1.msra.mxu0 %v2199
    %2201 = vmatprep.subr.mxu0 0.0
    %v2202 = vand.u32 %v28, 4294901760
    %2203 = vmatpush1.msra.mxu0 %v2202
    %2204 = vmatprep.subr.mxu0 0.0
    %v2205 = vand.u32 %v29, 4294901760
    %2206 = vmatpush1.msra.mxu0 %v2205
    %2207 = vmatprep.subr.mxu0 0.0
    %v2208 = vand.u32 %v30, 4294901760
    %2209 = vmatpush1.msra.mxu0 %v2208
    %2210 = vmatprep.subr.mxu0 0.0
    %v2211 = vand.u32 %v31, 4294901760
    %2212 = vmatpush1.msra.mxu0 %v2211
    %2213 = vmatprep.subr.mxu0 0.0
    %v2214 = vand.u32 %v32, 4294901760
    %2215 = vmatpush1.msra.mxu0 %v2214
    %2216 = vmatprep.subr.mxu0 0.0
    %v2217 = vand.u32 %v33, 4294901760
    %2218 = vmatpush1.msra.mxu0 %v2217
    %2219 = vmatprep.subr.mxu0 0.0
    %v2220 = vand.u32 %v34, 4294901760
    %2221 = vmatpush1.msra.mxu0 %v2220
    %2222 = vmatprep.subr.mxu0 0.0
    %v2223 = vand.u32 %v35, 4294901760
    %2224 = vmatpush1.msra.mxu0 %v2223
    %2225 = vmatprep.subr.mxu0 0.0
    %v2226 = vand.u32 %v36, 4294901760
    %2227 = vmatpush1.msra.mxu0 %v2226
    %2228 = vmatprep.subr.mxu0 0.0
    %v2229 = vand.u32 %v37, 4294901760
    %2230 = vmatpush1.msra.mxu0 %v2229
    %2231 = vmatprep.subr.mxu0 0.0
    %v2232 = vand.u32 %v38, 4294901760
    %2233 = vmatpush1.msra.mxu0 %v2232
    %2234 = vmatprep.subr.mxu0 0.0
    %v2235 = vand.u32 %v39, 4294901760
    %2236 = vmatpush1.msra.mxu0 %v2235
    %2237 = vmatprep.subr.mxu0 0.0
    %2238 = vmatpush1.msra.mxu0 0.0
    %2239 = vmatprep.subr.mxu0 0.0
    %2240 = vmatpush1.msra.mxu0 0.0
    %2241 = vmatprep.subr.mxu0 0.0
    %2242 = vmatpush1.msra.mxu0 0.0
    %2243 = vmatprep.subr.mxu0 0.0
    %2244 = vmatpush1.msra.mxu0 0.0
    %2245 = vmatprep.subr.mxu0 0.0
    %2246 = vmatpush1.msra.mxu0 0.0
    %2247 = vmatprep.subr.mxu0 0.0
    %2248 = vmatpush1.msra.mxu0 0.0
    %2249 = vmatprep.subr.mxu0 0.0
    %2250 = vmatpush1.msra.mxu0 0.0
    %2251 = vmatprep.subr.mxu0 0.0
    %2252 = vmatpush1.msra.mxu0 0.0
    %2253 = vmatprep.subr.mxu0 0.0
    %2254 = vmatpush1.msra.mxu0 0.0
    %2255 = vmatprep.subr.mxu0 0.0
    %2256 = vmatpush1.msra.mxu0 0.0
    %2257 = vmatprep.subr.mxu0 0.0
    %2258 = vmatpush1.msra.mxu0 0.0
    %2259 = vmatprep.subr.mxu0 0.0
    %2260 = vmatpush1.msra.mxu0 0.0
    %v2261 = vand.u32 %v1561, 4294901760
    %2262 = vmatprep.mubr.f32.mxu0 %v2261
    %v2263 = vand.u32 %v1558, 4294901760
    %2264 = vmatmul.mubr.f32.gmra.mrb[0].mxu0 %v2263
    %v2265 = vpop.f32.mrb[0].mxu0
    %v2266 = vadd.f32 %v2174, %v2265
    %v2267 = vpop.f32.mrb[0].mxu0
    %2268 = vdwg.mxu0
    %2269 = vmatprep.subr.mxu0 0.0
    %v2270 = vand.u32 %v40, 4294901760
    %2271 = vmatpush1.msra.mxu0 %v2270
    %2272 = vmatprep.subr.mxu0 0.0
    %v2273 = vand.u32 %v41, 4294901760
    %2274 = vmatpush1.msra.mxu0 %v2273
    %2275 = vmatprep.subr.mxu0 0.0
    %v2276 = vand.u32 %v42, 4294901760
    %2277 = vmatpush1.msra.mxu0 %v2276
    %2278 = vmatprep.subr.mxu0 0.0
    %v2279 = vand.u32 %v43, 4294901760
    %2280 = vmatpush1.msra.mxu0 %v2279
    %2281 = vmatprep.subr.mxu0 0.0
    %v2282 = vand.u32 %v44, 4294901760
    %2283 = vmatpush1.msra.mxu0 %v2282
    %2284 = vmatprep.subr.mxu0 0.0
    %v2285 = vand.u32 %v45, 4294901760
    %2286 = vmatpush1.msra.mxu0 %v2285
    %2287 = vmatprep.subr.mxu0 0.0
    %v2288 = vand.u32 %v46, 4294901760
    %2289 = vmatpush1.msra.mxu0 %v2288
    %2290 = vmatprep.subr.mxu0 0.0
    %v2291 = vand.u32 %v47, 4294901760
    %2292 = vmatpush1.msra.mxu0 %v2291
    %2293 = vmatprep.subr.mxu0 0.0
    %v2294 = vand.u32 %v48, 4294901760
    %2295 = vmatpush1.msra.mxu0 %v2294
    %2296 = vmatprep.subr.mxu0 0.0
    %v2297 = vand.u32 %v49, 4294901760
    %2298 = vmatpush1.msra.mxu0 %v2297
    %2299 = vmatprep.subr.mxu0 0.0
    %v2300 = vand.u32 %v50, 4294901760
    %2301 = vmatpush1.msra.mxu0 %v2300
    %2302 = vmatprep.subr.mxu0 0.0
    %v2303 = vand.u32 %v51, 4294901760
    %2304 = vmatpush1.msra.mxu0 %v2303
    %2305 = vmatprep.subr.mxu0 0.0
    %v2306 = vand.u32 %v52, 4294901760
    %2307 = vmatpush1.msra.mxu0 %v2306
    %2308 = vmatprep.subr.mxu0 0.0
    %v2309 = vand.u32 %v53, 4294901760
    %2310 = vmatpush1.msra.mxu0 %v2309
    %2311 = vmatprep.subr.mxu0 0.0
    %v2312 = vand.u32 %v54, 4294901760
    %2313 = vmatpush1.msra.mxu0 %v2312
    %2314 = vmatprep.subr.mxu0 0.0
    %v2315 = vand.u32 %v55, 4294901760
    %2316 = vmatpush1.msra.mxu0 %v2315
    %2317 = vmatprep.subr.mxu0 0.0
    %v2318 = vand.u32 %v56, 4294901760
    %2319 = vmatpush1.msra.mxu0 %v2318
    %2320 = vmatprep.subr.mxu0 0.0
    %v2321 = vand.u32 %v57, 4294901760
    %2322 = vmatpush1.msra.mxu0 %v2321
    %2323 = vmatprep.subr.mxu0 0.0
    %v2324 = vand.u32 %v58, 4294901760
    %2325 = vmatpush1.msra.mxu0 %v2324
    %2326 = vmatprep.subr.mxu0 0.0
    %v2327 = vand.u32 %v59, 4294901760
    %2328 = vmatpush1.msra.mxu0 %v2327
    %2329 = vmatprep.subr.mxu0 0.0
    %2330 = vmatpush1.msra.mxu0 0.0
    %2331 = vmatprep.subr.mxu0 0.0
    %2332 = vmatpush1.msra.mxu0 0.0
    %2333 = vmatprep.subr.mxu0 0.0
    %2334 = vmatpush1.msra.mxu0 0.0
    %2335 = vmatprep.subr.mxu0 0.0
    %2336 = vmatpush1.msra.mxu0 0.0
    %2337 = vmatprep.subr.mxu0 0.0
    %2338 = vmatpush1.msra.mxu0 0.0
    %2339 = vmatprep.subr.mxu0 0.0
    %2340 = vmatpush1.msra.mxu0 0.0
    %2341 = vmatprep.subr.mxu0 0.0
    %2342 = vmatpush1.msra.mxu0 0.0
    %2343 = vmatprep.subr.mxu0 0.0
    %2344 = vmatpush1.msra.mxu0 0.0
    %2345 = vmatprep.subr.mxu0 0.0
    %2346 = vmatpush1.msra.mxu0 0.0
    %2347 = vmatprep.subr.mxu0 0.0
    %2348 = vmatpush1.msra.mxu0 0.0
    %2349 = vmatprep.subr.mxu0 0.0
    %2350 = vmatpush1.msra.mxu0 0.0
    %2351 = vmatprep.subr.mxu0 0.0
    %2352 = vmatpush1.msra.mxu0 0.0
    %v2353 = vand.u32 %v1561, 4294901760
    %v2354 = vsub.f32 %v1561, %v2353
    %v2355 = vand.u32 %v2354, 4294901760
    %v2356 = vsub.f32 %v2354, %v2355
    %v2357 = vand.u32 %v2356, 4294901760
    %2358 = vmatprep.mubr.f32.mxu0 %v2357
    %v2359 = vand.u32 %v1558, 4294901760
    %v2360 = vsub.f32 %v1558, %v2359
    %v2361 = vand.u32 %v2360, 4294901760
    %v2362 = vsub.f32 %v2360, %v2361
    %v2363 = vand.u32 %v2362, 4294901760
    %2364 = vmatmul.mubr.f32.gmra.mrb[0].mxu0 %v2363
    %v2365 = vpop.f32.mrb[0].mxu0
    %v2366 = vadd.f32 0.0, %v2365
    %v2367 = vpop.f32.mrb[0].mxu0
    %2368 = vdwg.mxu0
    %2369 = vmatprep.subr.mxu0 0.0
    %v2370 = vand.u32 %v40, 4294901760
    %v2371 = vsub.f32 %v40, %v2370
    %v2372 = vand.u32 %v2371, 4294901760
    %v2373 = vsub.f32 %v2371, %v2372
    %v2374 = vand.u32 %v2373, 4294901760
    %2375 = vmatpush1.msra.mxu0 %v2374
    %2376 = vmatprep.subr.mxu0 0.0
    %v2377 = vand.u32 %v41, 4294901760
    %v2378 = vsub.f32 %v41, %v2377
    %v2379 = vand.u32 %v2378, 4294901760
    %v2380 = vsub.f32 %v2378, %v2379
    %v2381 = vand.u32 %v2380, 4294901760
    %2382 = vmatpush1.msra.mxu0 %v2381
    %2383 = vmatprep.subr.mxu0 0.0
    %v2384 = vand.u32 %v42, 4294901760
    %v2385 = vsub.f32 %v42, %v2384
    %v2386 = vand.u32 %v2385, 4294901760
    %v2387 = vsub.f32 %v2385, %v2386
    %v2388 = vand.u32 %v2387, 4294901760
    %2389 = vmatpush1.msra.mxu0 %v2388
    %2390 = vmatprep.subr.mxu0 0.0
    %v2391 = vand.u32 %v43, 4294901760
    %v2392 = vsub.f32 %v43, %v2391
    %v2393 = vand.u32 %v2392, 4294901760
    %v2394 = vsub.f32 %v2392, %v2393
    %v2395 = vand.u32 %v2394, 4294901760
    %2396 = vmatpush1.msra.mxu0 %v2395
    %2397 = vmatprep.subr.mxu0 0.0
    %v2398 = vand.u32 %v44, 4294901760
    %v2399 = vsub.f32 %v44, %v2398
    %v2400 = vand.u32 %v2399, 4294901760
    %v2401 = vsub.f32 %v2399, %v2400
    %v2402 = vand.u32 %v2401, 4294901760
    %2403 = vmatpush1.msra.mxu0 %v2402
    %2404 = vmatprep.subr.mxu0 0.0
    %v2405 = vand.u32 %v45, 4294901760
    %v2406 = vsub.f32 %v45, %v2405
    %v2407 = vand.u32 %v2406, 4294901760
    %v2408 = vsub.f32 %v2406, %v2407
    %v2409 = vand.u32 %v2408, 4294901760
    %2410 = vmatpush1.msra.mxu0 %v2409
    %2411 = vmatprep.subr.mxu0 0.0
    %v2412 = vand.u32 %v46, 4294901760
    %v2413 = vsub.f32 %v46, %v2412
    %v2414 = vand.u32 %v2413, 4294901760
    %v2415 = vsub.f32 %v2413, %v2414
    %v2416 = vand.u32 %v2415, 4294901760
    %2417 = vmatpush1.msra.mxu0 %v2416
    %2418 = vmatprep.subr.mxu0 0.0
    %v2419 = vand.u32 %v47, 4294901760
    %v2420 = vsub.f32 %v47, %v2419
    %v2421 = vand.u32 %v2420, 4294901760
    %v2422 = vsub.f32 %v2420, %v2421
    %v2423 = vand.u32 %v2422, 4294901760
    %2424 = vmatpush1.msra.mxu0 %v2423
    %2425 = vmatprep.subr.mxu0 0.0
    %v2426 = vand.u32 %v48, 4294901760
    %v2427 = vsub.f32 %v48, %v2426
    %v2428 = vand.u32 %v2427, 4294901760
    %v2429 = vsub.f32 %v2427, %v2428
    %v2430 = vand.u32 %v2429, 4294901760
    %2431 = vmatpush1.msra.mxu0 %v2430
    %2432 = vmatprep.subr.mxu0 0.0
    %v2433 = vand.u32 %v49, 4294901760
    %v2434 = vsub.f32 %v49, %v2433
    %v2435 = vand.u32 %v2434, 4294901760
    %v2436 = vsub.f32 %v2434, %v2435
    %v2437 = vand.u32 %v2436, 4294901760
    %2438 = vmatpush1.msra.mxu0 %v2437
    %2439 = vmatprep.subr.mxu0 0.0
    %v2440 = vand.u32 %v50, 4294901760
    %v2441 = vsub.f32 %v50, %v2440
    %v2442 = vand.u32 %v2441, 4294901760
    %v2443 = vsub.f32 %v2441, %v2442
    %v2444 = vand.u32 %v2443, 4294901760
    %2445 = vmatpush1.msra.mxu0 %v2444
    %2446 = vmatprep.subr.mxu0 0.0
    %v2447 = vand.u32 %v51, 4294901760
    %v2448 = vsub.f32 %v51, %v2447
    %v2449 = vand.u32 %v2448, 4294901760
    %v2450 = vsub.f32 %v2448, %v2449
    %v2451 = vand.u32 %v2450, 4294901760
    %2452 = vmatpush1.msra.mxu0 %v2451
    %2453 = vmatprep.subr.mxu0 0.0
    %v2454 = vand.u32 %v52, 4294901760
    %v2455 = vsub.f32 %v52, %v2454
    %v2456 = vand.u32 %v2455, 4294901760
    %v2457 = vsub.f32 %v2455, %v2456
    %v2458 = vand.u32 %v2457, 4294901760
    %2459 = vmatpush1.msra.mxu0 %v2458
    %2460 = vmatprep.subr.mxu0 0.0
    %v2461 = vand.u32 %v53, 4294901760
    %v2462 = vsub.f32 %v53, %v2461
    %v2463 = vand.u32 %v2462, 4294901760
    %v2464 = vsub.f32 %v2462, %v2463
    %v2465 = vand.u32 %v2464, 4294901760
    %2466 = vmatpush1.msra.mxu0 %v2465
    %2467 = vmatprep.subr.mxu0 0.0
    %v2468 = vand.u32 %v54, 4294901760
    %v2469 = vsub.f32 %v54, %v2468
    %v2470 = vand.u32 %v2469, 4294901760
    %v2471 = vsub.f32 %v2469, %v2470
    %v2472 = vand.u32 %v2471, 4294901760
    %2473 = vmatpush1.msra.mxu0 %v2472
    %2474 = vmatprep.subr.mxu0 0.0
    %v2475 = vand.u32 %v55, 4294901760
    %v2476 = vsub.f32 %v55, %v2475
    %v2477 = vand.u32 %v2476, 4294901760
    %v2478 = vsub.f32 %v2476, %v2477
    %v2479 = vand.u32 %v2478, 4294901760
    %2480 = vmatpush1.msra.mxu0 %v2479
    %2481 = vmatprep.subr.mxu0 0.0
    %v2482 = vand.u32 %v56, 4294901760
    %v2483 = vsub.f32 %v56, %v2482
    %v2484 = vand.u32 %v2483, 4294901760
    %v2485 = vsub.f32 %v2483, %v2484
    %v2486 = vand.u32 %v2485, 4294901760
    %2487 = vmatpush1.msra.mxu0 %v2486
    %2488 = vmatprep.subr.mxu0 0.0
    %v2489 = vand.u32 %v57, 4294901760
    %v2490 = vsub.f32 %v57, %v2489
    %v2491 = vand.u32 %v2490, 4294901760
    %v2492 = vsub.f32 %v2490, %v2491
    %v2493 = vand.u32 %v2492, 4294901760
    %2494 = vmatpush1.msra.mxu0 %v2493
    %2495 = vmatprep.subr.mxu0 0.0
    %v2496 = vand.u32 %v58, 4294901760
    %v2497 = vsub.f32 %v58, %v2496
    %v2498 = vand.u32 %v2497, 4294901760
    %v2499 = vsub.f32 %v2497, %v2498
    %v2500 = vand.u32 %v2499, 4294901760
    %2501 = vmatpush1.msra.mxu0 %v2500
    %2502 = vmatprep.subr.mxu0 0.0
    %v2503 = vand.u32 %v59, 4294901760
    %v2504 = vsub.f32 %v59, %v2503
    %v2505 = vand.u32 %v2504, 4294901760
    %v2506 = vsub.f32 %v2504, %v2505
    %v2507 = vand.u32 %v2506, 4294901760
    %2508 = vmatpush1.msra.mxu0 %v2507
    %2509 = vmatprep.subr.mxu0 0.0
    %2510 = vmatpush1.msra.mxu0 0.0
    %2511 = vmatprep.subr.mxu0 0.0
    %2512 = vmatpush1.msra.mxu0 0.0
    %2513 = vmatprep.subr.mxu0 0.0
    %2514 = vmatpush1.msra.mxu0 0.0
    %2515 = vmatprep.subr.mxu0 0.0
    %2516 = vmatpush1.msra.mxu0 0.0
    %2517 = vmatprep.subr.mxu0 0.0
    %2518 = vmatpush1.msra.mxu0 0.0
    %2519 = vmatprep.subr.mxu0 0.0
    %2520 = vmatpush1.msra.mxu0 0.0
    %2521 = vmatprep.subr.mxu0 0.0
    %2522 = vmatpush1.msra.mxu0 0.0
    %2523 = vmatprep.subr.mxu0 0.0
    %2524 = vmatpush1.msra.mxu0 0.0
    %2525 = vmatprep.subr.mxu0 0.0
    %2526 = vmatpush1.msra.mxu0 0.0
    %2527 = vmatprep.subr.mxu0 0.0
    %2528 = vmatpush1.msra.mxu0 0.0
    %2529 = vmatprep.subr.mxu0 0.0
    %2530 = vmatpush1.msra.mxu0 0.0
    %2531 = vmatprep.subr.mxu0 0.0
    %2532 = vmatpush1.msra.mxu0 0.0
    %v2533 = vand.u32 %v1561, 4294901760
    %2534 = vmatprep.mubr.f32.mxu0 %v2533
    %v2535 = vand.u32 %v1558, 4294901760
    %2536 = vmatmul.mubr.f32.gmra.mrb[0].mxu0 %v2535
    %v2537 = vpop.f32.mrb[0].mxu0
    %v2538 = vadd.f32 %v2366, %v2537
    %v2539 = vpop.f32.mrb[0].mxu0
    %2540 = vdwg.mxu0
    %2541 = vmatprep.subr.mxu0 0.0
    %v2542 = vand.u32 %v40, 4294901760
    %v2543 = vsub.f32 %v40, %v2542
    %2544 = vmatpush1.msra.mxu0 %v2543
    %2545 = vmatprep.subr.mxu0 0.0
    %v2546 = vand.u32 %v41, 4294901760
    %v2547 = vsub.f32 %v41, %v2546
    %2548 = vmatpush1.msra.mxu0 %v2547
    %2549 = vmatprep.subr.mxu0 0.0
    %v2550 = vand.u32 %v42, 4294901760
    %v2551 = vsub.f32 %v42, %v2550
    %2552 = vmatpush1.msra.mxu0 %v2551
    %2553 = vmatprep.subr.mxu0 0.0
    %v2554 = vand.u32 %v43, 4294901760
    %v2555 = vsub.f32 %v43, %v2554
    %2556 = vmatpush1.msra.mxu0 %v2555
    %2557 = vmatprep.subr.mxu0 0.0
    %v2558 = vand.u32 %v44, 4294901760
    %v2559 = vsub.f32 %v44, %v2558
    %2560 = vmatpush1.msra.mxu0 %v2559
    %2561 = vmatprep.subr.mxu0 0.0
    %v2562 = vand.u32 %v45, 4294901760
    %v2563 = vsub.f32 %v45, %v2562
    %2564 = vmatpush1.msra.mxu0 %v2563
    %2565 = vmatprep.subr.mxu0 0.0
    %v2566 = vand.u32 %v46, 4294901760
    %v2567 = vsub.f32 %v46, %v2566
    %2568 = vmatpush1.msra.mxu0 %v2567
    %2569 = vmatprep.subr.mxu0 0.0
    %v2570 = vand.u32 %v47, 4294901760
    %v2571 = vsub.f32 %v47, %v2570
    %2572 = vmatpush1.msra.mxu0 %v2571
    %2573 = vmatprep.subr.mxu0 0.0
    %v2574 = vand.u32 %v48, 4294901760
    %v2575 = vsub.f32 %v48, %v2574
    %2576 = vmatpush1.msra.mxu0 %v2575
    %2577 = vmatprep.subr.mxu0 0.0
    %v2578 = vand.u32 %v49, 4294901760
    %v2579 = vsub.f32 %v49, %v2578
    %2580 = vmatpush1.msra.mxu0 %v2579
    %2581 = vmatprep.subr.mxu0 0.0
    %v2582 = vand.u32 %v50, 4294901760
    %v2583 = vsub.f32 %v50, %v2582
    %2584 = vmatpush1.msra.mxu0 %v2583
    %2585 = vmatprep.subr.mxu0 0.0
    %v2586 = vand.u32 %v51, 4294901760
    %v2587 = vsub.f32 %v51, %v2586
    %2588 = vmatpush1.msra.mxu0 %v2587
    %2589 = vmatprep.subr.mxu0 0.0
    %v2590 = vand.u32 %v52, 4294901760
    %v2591 = vsub.f32 %v52, %v2590
    %2592 = vmatpush1.msra.mxu0 %v2591
    %2593 = vmatprep.subr.mxu0 0.0
    %v2594 = vand.u32 %v53, 4294901760
    %v2595 = vsub.f32 %v53, %v2594
    %2596 = vmatpush1.msra.mxu0 %v2595
    %2597 = vmatprep.subr.mxu0 0.0
    %v2598 = vand.u32 %v54, 4294901760
    %v2599 = vsub.f32 %v54, %v2598
    %2600 = vmatpush1.msra.mxu0 %v2599
    %2601 = vmatprep.subr.mxu0 0.0
    %v2602 = vand.u32 %v55, 4294901760
    %v2603 = vsub.f32 %v55, %v2602
    %2604 = vmatpush1.msra.mxu0 %v2603
    %2605 = vmatprep.subr.mxu0 0.0
    %v2606 = vand.u32 %v56, 4294901760
    %v2607 = vsub.f32 %v56, %v2606
    %2608 = vmatpush1.msra.mxu0 %v2607
    %2609 = vmatprep.subr.mxu0 0.0
    %v2610 = vand.u32 %v57, 4294901760
    %v2611 = vsub.f32 %v57, %v2610
    %2612 = vmatpush1.msra.mxu0 %v2611
    %2613 = vmatprep.subr.mxu0 0.0
    %v2614 = vand.u32 %v58, 4294901760
    %v2615 = vsub.f32 %v58, %v2614
    %2616 = vmatpush1.msra.mxu0 %v2615
    %2617 = vmatprep.subr.mxu0 0.0
    %v2618 = vand.u32 %v59, 4294901760
    %v2619 = vsub.f32 %v59, %v2618
    %2620 = vmatpush1.msra.mxu0 %v2619
    %2621 = vmatprep.subr.mxu0 0.0
    %2622 = vmatpush1.msra.mxu0 0.0
    %2623 = vmatprep.subr.mxu0 0.0
    %2624 = vmatpush1.msra.mxu0 0.0
    %2625 = vmatprep.subr.mxu0 0.0
    %2626 = vmatpush1.msra.mxu0 0.0
    %2627 = vmatprep.subr.mxu0 0.0
    %2628 = vmatpush1.msra.mxu0 0.0
    %2629 = vmatprep.subr.mxu0 0.0
    %2630 = vmatpush1.msra.mxu0 0.0
    %2631 = vmatprep.subr.mxu0 0.0
    %2632 = vmatpush1.msra.mxu0 0.0
    %2633 = vmatprep.subr.mxu0 0.0
    %2634 = vmatpush1.msra.mxu0 0.0
    %2635 = vmatprep.subr.mxu0 0.0
    %2636 = vmatpush1.msra.mxu0 0.0
    %2637 = vmatprep.subr.mxu0 0.0
    %2638 = vmatpush1.msra.mxu0 0.0
    %2639 = vmatprep.subr.mxu0 0.0
    %2640 = vmatpush1.msra.mxu0 0.0
    %2641 = vmatprep.subr.mxu0 0.0
    %2642 = vmatpush1.msra.mxu0 0.0
    %2643 = vmatprep.subr.mxu0 0.0
    %2644 = vmatpush1.msra.mxu0 0.0
    %v2645 = vand.u32 %v1561, 4294901760
    %v2646 = vsub.f32 %v1561, %v2645
    %2647 = vmatprep.mubr.f32.mxu0 %v2646
    %v2648 = vand.u32 %v1558, 4294901760
    %v2649 = vsub.f32 %v1558, %v2648
    %2650 = vmatmul.mubr.f32.gmra.mrb[0].mxu0 %v2649
    %v2651 = vpop.f32.mrb[0].mxu0
    %v2652 = vadd.f32 %v2538, %v2651
    %v2653 = vpop.f32.mrb[0].mxu0
    %2654 = vdwg.mxu0
    %2655 = vmatprep.subr.mxu0 0.0
    %v2656 = vand.u32 %v40, 4294901760
    %2657 = vmatpush1.msra.mxu0 %v2656
    %2658 = vmatprep.subr.mxu0 0.0
    %v2659 = vand.u32 %v41, 4294901760
    %2660 = vmatpush1.msra.mxu0 %v2659
    %2661 = vmatprep.subr.mxu0 0.0
    %v2662 = vand.u32 %v42, 4294901760
    %2663 = vmatpush1.msra.mxu0 %v2662
    %2664 = vmatprep.subr.mxu0 0.0
    %v2665 = vand.u32 %v43, 4294901760
    %2666 = vmatpush1.msra.mxu0 %v2665
    %2667 = vmatprep.subr.mxu0 0.0
    %v2668 = vand.u32 %v44, 4294901760
    %2669 = vmatpush1.msra.mxu0 %v2668
    %2670 = vmatprep.subr.mxu0 0.0
    %v2671 = vand.u32 %v45, 4294901760
    %2672 = vmatpush1.msra.mxu0 %v2671
    %2673 = vmatprep.subr.mxu0 0.0
    %v2674 = vand.u32 %v46, 4294901760
    %2675 = vmatpush1.msra.mxu0 %v2674
    %2676 = vmatprep.subr.mxu0 0.0
    %v2677 = vand.u32 %v47, 4294901760
    %2678 = vmatpush1.msra.mxu0 %v2677
    %2679 = vmatprep.subr.mxu0 0.0
    %v2680 = vand.u32 %v48, 4294901760
    %2681 = vmatpush1.msra.mxu0 %v2680
    %2682 = vmatprep.subr.mxu0 0.0
    %v2683 = vand.u32 %v49, 4294901760
    %2684 = vmatpush1.msra.mxu0 %v2683
    %2685 = vmatprep.subr.mxu0 0.0
    %v2686 = vand.u32 %v50, 4294901760
    %2687 = vmatpush1.msra.mxu0 %v2686
    %2688 = vmatprep.subr.mxu0 0.0
    %v2689 = vand.u32 %v51, 4294901760
    %2690 = vmatpush1.msra.mxu0 %v2689
    %2691 = vmatprep.subr.mxu0 0.0
    %v2692 = vand.u32 %v52, 4294901760
    %2693 = vmatpush1.msra.mxu0 %v2692
    %2694 = vmatprep.subr.mxu0 0.0
    %v2695 = vand.u32 %v53, 4294901760
    %2696 = vmatpush1.msra.mxu0 %v2695
    %2697 = vmatprep.subr.mxu0 0.0
    %v2698 = vand.u32 %v54, 4294901760
    %2699 = vmatpush1.msra.mxu0 %v2698
    %2700 = vmatprep.subr.mxu0 0.0
    %v2701 = vand.u32 %v55, 4294901760
    %2702 = vmatpush1.msra.mxu0 %v2701
    %2703 = vmatprep.subr.mxu0 0.0
    %v2704 = vand.u32 %v56, 4294901760
    %2705 = vmatpush1.msra.mxu0 %v2704
    %2706 = vmatprep.subr.mxu0 0.0
    %v2707 = vand.u32 %v57, 4294901760
    %2708 = vmatpush1.msra.mxu0 %v2707
    %2709 = vmatprep.subr.mxu0 0.0
    %v2710 = vand.u32 %v58, 4294901760
    %2711 = vmatpush1.msra.mxu0 %v2710
    %2712 = vmatprep.subr.mxu0 0.0
    %v2713 = vand.u32 %v59, 4294901760
    %2714 = vmatpush1.msra.mxu0 %v2713
    %2715 = vmatprep.subr.mxu0 0.0
    %2716 = vmatpush1.msra.mxu0 0.0
    %2717 = vmatprep.subr.mxu0 0.0
    %2718 = vmatpush1.msra.mxu0 0.0
    %2719 = vmatprep.subr.mxu0 0.0
    %2720 = vmatpush1.msra.mxu0 0.0
    %2721 = vmatprep.subr.mxu0 0.0
    %2722 = vmatpush1.msra.mxu0 0.0
    %2723 = vmatprep.subr.mxu0 0.0
    %2724 = vmatpush1.msra.mxu0 0.0
    %2725 = vmatprep.subr.mxu0 0.0
    %2726 = vmatpush1.msra.mxu0 0.0
    %2727 = vmatprep.subr.mxu0 0.0
    %2728 = vmatpush1.msra.mxu0 0.0
    %2729 = vmatprep.subr.mxu0 0.0
    %2730 = vmatpush1.msra.mxu0 0.0
    %2731 = vmatprep.subr.mxu0 0.0
    %2732 = vmatpush1.msra.mxu0 0.0
    %2733 = vmatprep.subr.mxu0 0.0
    %2734 = vmatpush1.msra.mxu0 0.0
    %2735 = vmatprep.subr.mxu0 0.0
    %2736 = vmatpush1.msra.mxu0 0.0
    %2737 = vmatprep.subr.mxu0 0.0
    %2738 = vmatpush1.msra.mxu0 0.0
    %v2739 = vand.u32 %v1561, 4294901760
    %v2740 = vsub.f32 %v1561, %v2739
    %v2741 = vand.u32 %v2740, 4294901760
    %2742 = vmatprep.mubr.f32.mxu0 %v2741
    %v2743 = vand.u32 %v1558, 4294901760
    %v2744 = vsub.f32 %v1558, %v2743
    %v2745 = vand.u32 %v2744, 4294901760
    %2746 = vmatmul.mubr.f32.gmra.mrb[0].mxu0 %v2745
    %v2747 = vpop.f32.mrb[0].mxu0
    %v2748 = vadd.f32 %v2652, %v2747
    %v2749 = vpop.f32.mrb[0].mxu0
    %2750 = vdwg.mxu0
    %2751 = vmatprep.subr.mxu0 0.0
    %v2752 = vand.u32 %v40, 4294901760
    %v2753 = vsub.f32 %v40, %v2752
    %v2754 = vand.u32 %v2753, 4294901760
    %2755 = vmatpush1.msra.mxu0 %v2754
    %2756 = vmatprep.subr.mxu0 0.0
    %v2757 = vand.u32 %v41, 4294901760
    %v2758 = vsub.f32 %v41, %v2757
    %v2759 = vand.u32 %v2758, 4294901760
    %2760 = vmatpush1.msra.mxu0 %v2759
    %2761 = vmatprep.subr.mxu0 0.0
    %v2762 = vand.u32 %v42, 4294901760
    %v2763 = vsub.f32 %v42, %v2762
    %v2764 = vand.u32 %v2763, 4294901760
    %2765 = vmatpush1.msra.mxu0 %v2764
    %2766 = vmatprep.subr.mxu0 0.0
    %v2767 = vand.u32 %v43, 4294901760
    %v2768 = vsub.f32 %v43, %v2767
    %v2769 = vand.u32 %v2768, 4294901760
    %2770 = vmatpush1.msra.mxu0 %v2769
    %2771 = vmatprep.subr.mxu0 0.0
    %v2772 = vand.u32 %v44, 4294901760
    %v2773 = vsub.f32 %v44, %v2772
    %v2774 = vand.u32 %v2773, 4294901760
    %2775 = vmatpush1.msra.mxu0 %v2774
    %2776 = vmatprep.subr.mxu0 0.0
    %v2777 = vand.u32 %v45, 4294901760
    %v2778 = vsub.f32 %v45, %v2777
    %v2779 = vand.u32 %v2778, 4294901760
    %2780 = vmatpush1.msra.mxu0 %v2779
    %2781 = vmatprep.subr.mxu0 0.0
    %v2782 = vand.u32 %v46, 4294901760
    %v2783 = vsub.f32 %v46, %v2782
    %v2784 = vand.u32 %v2783, 4294901760
    %2785 = vmatpush1.msra.mxu0 %v2784
    %2786 = vmatprep.subr.mxu0 0.0
    %v2787 = vand.u32 %v47, 4294901760
    %v2788 = vsub.f32 %v47, %v2787
    %v2789 = vand.u32 %v2788, 4294901760
    %2790 = vmatpush1.msra.mxu0 %v2789
    %2791 = vmatprep.subr.mxu0 0.0
    %v2792 = vand.u32 %v48, 4294901760
    %v2793 = vsub.f32 %v48, %v2792
    %v2794 = vand.u32 %v2793, 4294901760
    %2795 = vmatpush1.msra.mxu0 %v2794
    %2796 = vmatprep.subr.mxu0 0.0
    %v2797 = vand.u32 %v49, 4294901760
    %v2798 = vsub.f32 %v49, %v2797
    %v2799 = vand.u32 %v2798, 4294901760
    %2800 = vmatpush1.msra.mxu0 %v2799
    %2801 = vmatprep.subr.mxu0 0.0
    %v2802 = vand.u32 %v50, 4294901760
    %v2803 = vsub.f32 %v50, %v2802
    %v2804 = vand.u32 %v2803, 4294901760
    %2805 = vmatpush1.msra.mxu0 %v2804
    %2806 = vmatprep.subr.mxu0 0.0
    %v2807 = vand.u32 %v51, 4294901760
    %v2808 = vsub.f32 %v51, %v2807
    %v2809 = vand.u32 %v2808, 4294901760
    %2810 = vmatpush1.msra.mxu0 %v2809
    %2811 = vmatprep.subr.mxu0 0.0
    %v2812 = vand.u32 %v52, 4294901760
    %v2813 = vsub.f32 %v52, %v2812
    %v2814 = vand.u32 %v2813, 4294901760
    %2815 = vmatpush1.msra.mxu0 %v2814
    %2816 = vmatprep.subr.mxu0 0.0
    %v2817 = vand.u32 %v53, 4294901760
    %v2818 = vsub.f32 %v53, %v2817
    %v2819 = vand.u32 %v2818, 4294901760
    %2820 = vmatpush1.msra.mxu0 %v2819
    %2821 = vmatprep.subr.mxu0 0.0
    %v2822 = vand.u32 %v54, 4294901760
    %v2823 = vsub.f32 %v54, %v2822
    %v2824 = vand.u32 %v2823, 4294901760
    %2825 = vmatpush1.msra.mxu0 %v2824
    %2826 = vmatprep.subr.mxu0 0.0
    %v2827 = vand.u32 %v55, 4294901760
    %v2828 = vsub.f32 %v55, %v2827
    %v2829 = vand.u32 %v2828, 4294901760
    %2830 = vmatpush1.msra.mxu0 %v2829
    %2831 = vmatprep.subr.mxu0 0.0
    %v2832 = vand.u32 %v56, 4294901760
    %v2833 = vsub.f32 %v56, %v2832
    %v2834 = vand.u32 %v2833, 4294901760
    %2835 = vmatpush1.msra.mxu0 %v2834
    %2836 = vmatprep.subr.mxu0 0.0
    %v2837 = vand.u32 %v57, 4294901760
    %v2838 = vsub.f32 %v57, %v2837
    %v2839 = vand.u32 %v2838, 4294901760
    %2840 = vmatpush1.msra.mxu0 %v2839
    %2841 = vmatprep.subr.mxu0 0.0
    %v2842 = vand.u32 %v58, 4294901760
    %v2843 = vsub.f32 %v58, %v2842
    %v2844 = vand.u32 %v2843, 4294901760
    %2845 = vmatpush1.msra.mxu0 %v2844
    %2846 = vmatprep.subr.mxu0 0.0
    %v2847 = vand.u32 %v59, 4294901760
    %v2848 = vsub.f32 %v59, %v2847
    %v2849 = vand.u32 %v2848, 4294901760
    %2850 = vmatpush1.msra.mxu0 %v2849
    %2851 = vmatprep.subr.mxu0 0.0
    %2852 = vmatpush1.msra.mxu0 0.0
    %2853 = vmatprep.subr.mxu0 0.0
    %2854 = vmatpush1.msra.mxu0 0.0
    %2855 = vmatprep.subr.mxu0 0.0
    %2856 = vmatpush1.msra.mxu0 0.0
    %2857 = vmatprep.subr.mxu0 0.0
    %2858 = vmatpush1.msra.mxu0 0.0
    %2859 = vmatprep.subr.mxu0 0.0
    %2860 = vmatpush1.msra.mxu0 0.0
    %2861 = vmatprep.subr.mxu0 0.0
    %2862 = vmatpush1.msra.mxu0 0.0
    %2863 = vmatprep.subr.mxu0 0.0
    %2864 = vmatpush1.msra.mxu0 0.0
    %2865 = vmatprep.subr.mxu0 0.0
    %2866 = vmatpush1.msra.mxu0 0.0
    %2867 = vmatprep.subr.mxu0 0.0
    %2868 = vmatpush1.msra.mxu0 0.0
    %2869 = vmatprep.subr.mxu0 0.0
    %2870 = vmatpush1.msra.mxu0 0.0
    %2871 = vmatprep.subr.mxu0 0.0
    %2872 = vmatpush1.msra.mxu0 0.0
    %2873 = vmatprep.subr.mxu0 0.0
    %2874 = vmatpush1.msra.mxu0 0.0
    %v2875 = vand.u32 %v1561, 4294901760
    %2876 = vmatprep.mubr.f32.mxu0 %v2875
    %v2877 = vand.u32 %v1558, 4294901760
    %2878 = vmatmul.mubr.f32.gmra.mrb[0].mxu0 %v2877
    %v2879 = vpop.f32.mrb[0].mxu0
    %v2880 = vadd.f32 %v2748, %v2879
    %v2881 = vpop.f32.mrb[0].mxu0
    %2882 = vdwg.mxu0
    %2883 = vmatprep.subr.mxu0 0.0
    %v2884 = vand.u32 %v40, 4294901760
    %2885 = vmatpush1.msra.mxu0 %v2884
    %2886 = vmatprep.subr.mxu0 0.0
    %v2887 = vand.u32 %v41, 4294901760
    %2888 = vmatpush1.msra.mxu0 %v2887
    %2889 = vmatprep.subr.mxu0 0.0
    %v2890 = vand.u32 %v42, 4294901760
    %2891 = vmatpush1.msra.mxu0 %v2890
    %2892 = vmatprep.subr.mxu0 0.0
    %v2893 = vand.u32 %v43, 4294901760
    %2894 = vmatpush1.msra.mxu0 %v2893
    %2895 = vmatprep.subr.mxu0 0.0
    %v2896 = vand.u32 %v44, 4294901760
    %2897 = vmatpush1.msra.mxu0 %v2896
    %2898 = vmatprep.subr.mxu0 0.0
    %v2899 = vand.u32 %v45, 4294901760
    %2900 = vmatpush1.msra.mxu0 %v2899
    %2901 = vmatprep.subr.mxu0 0.0
    %v2902 = vand.u32 %v46, 4294901760
    %2903 = vmatpush1.msra.mxu0 %v2902
    %2904 = vmatprep.subr.mxu0 0.0
    %v2905 = vand.u32 %v47, 4294901760
    %2906 = vmatpush1.msra.mxu0 %v2905
    %2907 = vmatprep.subr.mxu0 0.0
    %v2908 = vand.u32 %v48, 4294901760
    %2909 = vmatpush1.msra.mxu0 %v2908
    %2910 = vmatprep.subr.mxu0 0.0
    %v2911 = vand.u32 %v49, 4294901760
    %2912 = vmatpush1.msra.mxu0 %v2911
    %2913 = vmatprep.subr.mxu0 0.0
    %v2914 = vand.u32 %v50, 4294901760
    %2915 = vmatpush1.msra.mxu0 %v2914
    %2916 = vmatprep.subr.mxu0 0.0
    %v2917 = vand.u32 %v51, 4294901760
    %2918 = vmatpush1.msra.mxu0 %v2917
    %2919 = vmatprep.subr.mxu0 0.0
    %v2920 = vand.u32 %v52, 4294901760
    %2921 = vmatpush1.msra.mxu0 %v2920
    %2922 = vmatprep.subr.mxu0 0.0
    %v2923 = vand.u32 %v53, 4294901760
    %2924 = vmatpush1.msra.mxu0 %v2923
    %2925 = vmatprep.subr.mxu0 0.0
    %v2926 = vand.u32 %v54, 4294901760
    %2927 = vmatpush1.msra.mxu0 %v2926
    %2928 = vmatprep.subr.mxu0 0.0
    %v2929 = vand.u32 %v55, 4294901760
    %2930 = vmatpush1.msra.mxu0 %v2929
    %2931 = vmatprep.subr.mxu0 0.0
    %v2932 = vand.u32 %v56, 4294901760
    %2933 = vmatpush1.msra.mxu0 %v2932
    %2934 = vmatprep.subr.mxu0 0.0
    %v2935 = vand.u32 %v57, 4294901760
    %2936 = vmatpush1.msra.mxu0 %v2935
    %2937 = vmatprep.subr.mxu0 0.0
    %v2938 = vand.u32 %v58, 4294901760
    %2939 = vmatpush1.msra.mxu0 %v2938
    %2940 = vmatprep.subr.mxu0 0.0
    %v2941 = vand.u32 %v59, 4294901760
    %2942 = vmatpush1.msra.mxu0 %v2941
    %2943 = vmatprep.subr.mxu0 0.0
    %2944 = vmatpush1.msra.mxu0 0.0
    %2945 = vmatprep.subr.mxu0 0.0
    %2946 = vmatpush1.msra.mxu0 0.0
    %2947 = vmatprep.subr.mxu0 0.0
    %2948 = vmatpush1.msra.mxu0 0.0
    %2949 = vmatprep.subr.mxu0 0.0
    %2950 = vmatpush1.msra.mxu0 0.0
    %2951 = vmatprep.subr.mxu0 0.0
    %2952 = vmatpush1.msra.mxu0 0.0
    %2953 = vmatprep.subr.mxu0 0.0
    %2954 = vmatpush1.msra.mxu0 0.0
    %2955 = vmatprep.subr.mxu0 0.0
    %2956 = vmatpush1.msra.mxu0 0.0
    %2957 = vmatprep.subr.mxu0 0.0
    %2958 = vmatpush1.msra.mxu0 0.0
    %2959 = vmatprep.subr.mxu0 0.0
    %2960 = vmatpush1.msra.mxu0 0.0
    %2961 = vmatprep.subr.mxu0 0.0
    %2962 = vmatpush1.msra.mxu0 0.0
    %2963 = vmatprep.subr.mxu0 0.0
    %2964 = vmatpush1.msra.mxu0 0.0
    %2965 = vmatprep.subr.mxu0 0.0
    %2966 = vmatpush1.msra.mxu0 0.0
    %v2967 = vand.u32 %v1561, 4294901760
    %2968 = vmatprep.mubr.f32.mxu0 %v2967
    %v2969 = vand.u32 %v1558, 4294901760
    %2970 = vmatmul.mubr.f32.gmra.mrb[0].mxu0 %v2969
    %v2971 = vpop.f32.mrb[0].mxu0
    %v2972 = vadd.f32 %v2880, %v2971
    %v2973 = vpop.f32.mrb[0].mxu0
    %2974 = vdwg.mxu0
    %v2975 = vmul.f32 %v2266, %v2266
    %v2976 = vmul.f32 %v2972, %v2972
    %v2977 = vadd.f32 %v2975, %v2976
    %v2978 = vsel %vm1545, %v2977, 0.0
    %2979 = vadd.xlane.f32.xlu0 %v2978
    %v2980 = vpop.xlane.xlu0 %2979
    %v2981 = vrcp.pop %v2980
    %v2982 = vmul.f32 %v2977, %v2981
    %v2983 = vsub.f32 %v1550, %v2982
    %v2984 = vmul.f32 %v2983, %v2983
    %v2985 = vsel %vm1545, %v2984, 0.0
    %2986 = vadd.xlane.f32.xlu0 %v2985
    %v2987 = vpop.xlane.xlu0 %2986
    %v2988 = vsel %vm71, %v2987, 0.0
    %v2989 = vrot.slane %v2988, 4
    %v2990 = vadd.f32 %v2988, %v2989
    %v2991 = vrot.slane %v2990, 2
    %v2992 = vadd.f32 %v2990, %v2991
    %v2993 = vrot.slane %v2992, 1
    %v2994 = vadd.f32 %v2992, %v2993
    %v2995 = vmul.f32 %v2994, 0.03846154
    %vm2996 = vcmask 0
    %2997 = vst.msk [vmem:[#allocation2] sm:$0x1] %vm2996, %v2995
    // Predicated region
    $region18: #{tpu_custom_call.1} parent=1 // pred_check
      _
    $region19: #{tpu_custom_call.1} parent=1 // pred_check_branch
      %2999 = sbr.rel (0) target = $region21
    $region20: #{tpu_custom_call.1} parent=1 // pred_region
      %s3001 = ssub.s32 16, 16
      %3002 = vsyncadd [#allocation3], %s3001
      %s3004 = sshll.u32 [#allocation2], 4
      %s3005 = int_to_ptr.vmem [resolvable:$true] %s3004
      %3007 = dma.vmem_to_hbm [thread:$0]  %s3005, 16, %s4, [#allocation3]
    $region21: #{tpu_custom_call.1} parent=1 // pred_fallthru
      _
    // Predicated region
    $region22: #{tpu_custom_call.1} parent=1 // pred_check
      _
    $region23: #{tpu_custom_call.1} parent=1 // pred_check_branch
      %3009 = sbr.rel (0) target = $region25
    $region24: #{tpu_custom_call.1} parent=1 // pred_region
      %3010 = dma.done [#allocation3], 16
    $region25: #{tpu_custom_call.1} parent=1 // pred_fallthru
      _
    %3011 = vsyncpa [#allocation3], 1

</llo_original>
